<compile_context>
chip_gen: v7x
topology: tpu7x:2x2x1
jax: 0.10.0
libtpu: 0.0.40
codegen_flags: <defaults>
</compile_context>

<pallas_src>
import jax
import jax.numpy as jnp
import numpy as np
from jax.experimental import pallas as pl
from jax.experimental.pallas import tpu as pltpu


def _round_up(x, m):
    return ((x + m - 1) // m) * m


def _full_spec(shape):
    n = len(shape)
    return pl.BlockSpec(shape, lambda b, t, _n=n: (0,) * _n)


# --------------------------------- kernel -----------------------------------

def _make_kernel(layer_num, ksize, pad_l, pad_r, t_true, t_tile, halo_left,
                 filter_size, r, ln_eps=1e-5):
    """Builds the per-(batch, time-tile) kernel.

    refs = (x_tile, keep, [w, b, gamma, beta] * layer_num, wl, bl, out)
      x_tile : (1, 1, t_tile + layer_num*(K-1), Cin_pad)  bf16
      keep   : (1, 1, 1, t_tile)                          f32 (1 = keep, 0 = masked)
      w      : (K, Cin_pad, F_pad) bf16 ; b/gamma/beta : (1, F_pad) f32
      wl     : (r, F_pad) bf16 ; bl : (r, 1) f32
      out    : (1, 1, r, t_tile) f32   (time on the lane axis -> dense stores)
    """
    inv_f = 1.0 / float(filter_size)

    def kernel(x_ref, keep_ref, *rest):
        o_ref = rest[-1]
        params = rest[:-1]
        t_idx = pl.program_id(1)

        x = x_ref[0, 0]                       # (rows, Cin_pad) bf16
        rows = x.shape[0]

        idx = 0
        for l in range(layer_num):
            w_ref, b_ref, g_ref, be_ref = params[idx:idx + 4]
            idx += 4
            rows_out = rows - (ksize - 1)
            cout = w_ref.shape[2]

            # valid conv over the pre-haloed tile: per-tap MXU matmuls,
            # bf16 inputs, f32 accumulation.
            acc = jnp.zeros((rows_out, cout), jnp.float32)
            for tap in range(ksize):          # static unroll over kernel taps
                acc = acc + jnp.dot(x[tap:tap + rows_out, :], w_ref[tap],
                                    preferred_element_type=jnp.float32)
            h = acc + b_ref[...]              # (1, F_pad) broadcast
            h = jnp.maximum(h, 0.0)           # ReLU (padded lanes stay 0)

            # LayerNorm over the true filter_size channels, one-pass stats.
            mean = jnp.sum(h, axis=-1, keepdims=True) * inv_f
            mean2 = jnp.sum(h * h, axis=-1, keepdims=True) * inv_f
            var = jnp.maximum(mean2 - mean * mean, 0.0)
            hn = (h - mean) * jax.lax.rsqrt(var + ln_eps)
            y = hn * g_ref[...] + be_ref[...]  # padded lanes -> 0 (gamma=beta=0)

            # Zero rows whose global position is outside [0, T): this is
            # exactly PyTorch's per-layer zero padding at sequence boundaries
            # (and it also zeroes the T->Tp padding region, which is discarded
            # by the wrapper).
            g0 = t_idx * t_tile - halo_left + (l + 1) * pad_l
            gi = jax.lax.broadcasted_iota(jnp.int32, (rows_out, 1), 0) + g0
            valid = jnp.logical_and(gi >= 0, gi < t_true)
            y = jnp.where(valid, y, 0.0)

            x = y.astype(jnp.bfloat16)        # bf16 for the next MXU matmul
            rows = rows_out
            # Dropout -> identity (inference / eval semantics)

        # Final Linear as a wide-N matmul: (r, F_pad) x (t_tile, F_pad)^T
        # -> (r, t_tile).  Output lane dim = t_tile (>=128): lane-dense store,
        # no 1-wide MXU output column.
        wl_ref, bl_ref = params[idx], params[idx + 1]
        res = jax.lax.dot_general(
            wl_ref[...], x, (((1,), (1,)), ((), ())),
            preferred_element_type=jnp.float32)          # (r, t_tile)
        res = res + bl_ref[...]                          # (r, 1) broadcast
        res = res * keep_ref[0, 0]                       # masked_fill(mask, 0.0)
        o_ref[0, 0] = res.astype(o_ref.dtype)

    return kernel


# ----------------------------- module wrapper --------------------------------

class VariancePredictorPallas:
    TIME_TILE = 256       # multiple of 128; sized well under v7x's 64 MiB VMEM
    LANE = 128

    def __init__(self, encoder_hidden_dim, variance_predictor_filter_size,
                 variance_predictor_kernel_size, variance_predictor_layer_num,
                 variance_predictor_dropout, reduction_factor=1, *, key):
        self.input_size = encoder_hidden_dim
        self.filter_size = variance_predictor_filter_size
        self.kernel = variance_predictor_kernel_size
        self.layer_num = variance_predictor_layer_num
        self.reduction_factor = reduction_factor
        self.dropout = variance_predictor_dropout   # unused at inference

        self.pad_l = (self.kernel - 1) // 2
        self.pad_r = (self.kernel - 1) - self.pad_l
        self.cin_pad = _round_up(self.input_size, self.LANE)
        self.f_pad = _round_up(self.filter_size, self.LANE)

        # deterministic synthetic parameters
        keys = jax.random.split(key, 4 * self.layer_num + 2)
        ki = iter(range(len(keys)))

        self.ref_conv = []       # logical (unpadded) f32 params for reference
        self.kparams = []        # padded kernel-facing params (bf16 weights)
        cin, cin_p = self.input_size, self.cin_pad
        F, Fp, K, r = self.filter_size, self.f_pad, self.kernel, reduction_factor
        for _ in range(self.layer_num):
            w = 0.1 * jax.random.normal(keys[next(ki)], (K, cin, F), jnp.float32)
            b = 0.1 * jax.random.normal(keys[next(ki)], (F,), jnp.float32)
            g = 1.0 + 0.05 * jax.random.normal(keys[next(ki)], (F,), jnp.float32)
            be = 0.05 * jax.random.normal(keys[next(ki)], (F,), jnp.float32)
            self.ref_conv.append((w, b, g, be))

            wp = jnp.zeros((K, cin_p, Fp), jnp.bfloat16)
            wp = wp.at[:, :cin, :F].set(w.astype(jnp.bfloat16))
            bp = jnp.zeros((1, Fp), jnp.float32).at[0, :F].set(b)
            gp = jnp.zeros((1, Fp), jnp.float32).at[0, :F].set(g)   # pad gamma with 0
            bep = jnp.zeros((1, Fp), jnp.float32).at[0, :F].set(be)  # pad beta with 0
            self.kparams += [wp, bp, gp, bep]
            cin, cin_p = F, Fp

        wl = 0.1 * jax.random.normal(keys[next(ki)], (F, r), jnp.float32)
        bl = 0.1 * jax.random.normal(keys[next(ki)], (r,), jnp.float32)
        self.ref_linear = (wl, bl)
        wlp = jnp.zeros((r, Fp), jnp.bfloat16).at[:, :F].set(wl.T.astype(jnp.bfloat16))
        blp = bl.reshape(r, 1).astype(jnp.float32)
        self.kparams += [wlp, blp]

    # -------------------------------- forward --------------------------------
    def __call__(self, encoder_output, mask):
        B, T, Cin = encoder_output.shape
        r, L, K = self.reduction_factor, self.layer_num, self.kernel
        pad_l, pad_r = self.pad_l, self.pad_r
        HL, HR = L * pad_l, L * pad_r

        tT = min(self.TIME_TILE, _round_up(T, self.LANE))   # multiple of 128
        nT = -(-T // tT)
        Tp = nT * tT
        R0 = tT + HL + HR                                    # rows loaded per tile

        # bf16 activations, channel-pad to 128, time-pad (left halo, right halo
        # + Tp-T), then materialize overlapping halo'd time tiles.
        x = encoder_output.astype(jnp.bfloat16)
        x = jnp.pad(x, ((0, 0), (HL, (Tp - T) + HR), (0, self.cin_pad - Cin)))
        tile_idx = jnp.arange(nT)[:, None] * tT + jnp.arange(R0)[None, :]
        x_tiles = x[:, tile_idx, :]                          # (B, nT, R0, cin_pad)

        keep = 1.0 - mask.astype(jnp.float32)                # 1 = keep, 0 = masked
        keep = jnp.pad(keep, ((0, 0), (0, Tp - T)))
        keep = keep.reshape(B, nT, 1, tT)

        in_specs = [
            pl.BlockSpec((1, 1, R0, self.cin_pad), lambda b, t: (b, t, 0, 0)),
            pl.BlockSpec((1, 1, 1, tT), lambda b, t: (b, t, 0, 0)),
        ] + [_full_spec(p.shape) for p in self.kparams]

        out_tiles = pl.pallas_call(
            _make_kernel(L, K, pad_l, pad_r, T, tT, HL, self.filter_size, r),
            out_shape=jax.ShapeDtypeStruct((B, nT, r, tT), jnp.float32),
            grid_spec=pltpu.PrefetchScalarGridSpec(
                num_scalar_prefetch=0,
                grid=(B, nT),
                in_specs=in_specs,
                out_specs=pl.BlockSpec((1, 1, r, tT), lambda b, t: (b, t, 0, 0)),
            ),
            compiler_params=pltpu.CompilerParams(
                dimension_semantics=("parallel", "parallel"),
                vmem_limit_bytes=32 * 1024 * 1024),
        )(x_tiles, keep, *self.kparams)

        # (B, nT, r, tT) -> (B, nT, tT, r) -> (B, Tp*r) -> (B, T*r)
        out = jnp.transpose(out_tiles, (0, 1, 3, 2)).reshape(B, Tp * r)[:, :T * r]
        return out   # (B, T) for r == 1 (PyTorch squeeze), (B, T*r) otherwise

    # ---------------------------- pure-JAX reference -------------------------
    def reference(self, encoder_output, mask):
        B, T, _ = encoder_output.shape
        K = self.kernel
        pad_l, pad_r = self.pad_l, self.pad_r
        x = encoder_output.astype(jnp.float32)
        for (w, b, g, be) in self.ref_conv:
            xb = x.astype(jnp.bfloat16)
            xpad = jnp.pad(xb, ((0, 0), (pad_l, pad_r), (0, 0)))
            h = sum(jnp.einsum("btc,cf->btf", xpad[:, t:t + T, :],
                               w[t].astype(jnp.bfloat16),
                               preferred_element_type=jnp.float32)
                    for t in range(K))
            h = h + b[None, None, :]
            h = jnp.maximum(h, 0.0)
            mean = jnp.mean(h, axis=-1, keepdims=True)
            var = jnp.mean((h - mean) ** 2, axis=-1, keepdims=True)
            x = (h - mean) * jax.lax.rsqrt(var + 1e-5) * g + be
        wl, bl = self.ref_linear
        out = jnp.einsum("btf,fr->btr", x.astype(jnp.bfloat16),
                         wl.astype(jnp.bfloat16),
                         preferred_element_type=jnp.float32) + bl
        out = jnp.where(mask[:, :, None], 0.0, out)
        if self.reduction_factor > 1:
            return out.reshape(B, -1)
        return out[..., 0]


# ----------------------------------- main ------------------------------------

if __name__ == "__main__":
    B, T = 2, 16
    HID, FILT, KSIZE, NLAYERS = 32, 32, 3, 2

    key = jax.random.PRNGKey(0)
    k_param, k_x = jax.random.split(key)

    vp = VariancePredictorPallas(
        encoder_hidden_dim=HID,
        variance_predictor_filter_size=FILT,
        variance_predictor_kernel_size=KSIZE,
        variance_predictor_layer_num=NLAYERS,
        variance_predictor_dropout=0.5,
        reduction_factor=1,
        key=k_param,
    )

    encoder_output = jax.random.normal(k_x, (B, T, HID), jnp.float32)
    # mask: True = padded position (masked out); last 4 steps of sample 1 padded
    mask = jnp.zeros((B, T), dtype=bool).at[1, T - 4:].set(True)

    out = vp(encoder_output, mask)
    out = jax.block_until_ready(out)

    ref = vp.reference(encoder_output, mask)
    assert out.shape == (B, T), out.shape
    np.testing.assert_allclose(np.asarray(out), np.asarray(ref),
                               rtol=2e-3, atol=2e-3)
    print("KERNEL_OK")
</pallas_src>

<mosaic_0001>
module attributes {stable_mosaic.version = 11 : i64} {
  func.func @kernel(%arg0: i32, %arg1: i32, %arg2: memref<1x1x132x128xbf16, #tpu.memory_space<vmem>>, %arg3: memref<1x1x1x128xf32, #tpu.memory_space<vmem>>, %arg4: memref<3x128x128xbf16, #tpu.memory_space<vmem>>, %arg5: memref<1x128xf32, #tpu.memory_space<vmem>>, %arg6: memref<1x128xf32, #tpu.memory_space<vmem>>, %arg7: memref<1x128xf32, #tpu.memory_space<vmem>>, %arg8: memref<3x128x128xbf16, #tpu.memory_space<vmem>>, %arg9: memref<1x128xf32, #tpu.memory_space<vmem>>, %arg10: memref<1x128xf32, #tpu.memory_space<vmem>>, %arg11: memref<1x128xf32, #tpu.memory_space<vmem>>, %arg12: memref<1x128xbf16, #tpu.memory_space<vmem>>, %arg13: memref<1x1xf32, #tpu.memory_space<vmem>>, %arg14: memref<1x1x1x128xf32, #tpu.memory_space<vmem>>) attributes {dimension_semantics = [#tpu.dimension_semantics<parallel>, #tpu.dimension_semantics<parallel>], iteration_bounds = array<i64: 2, 1>, scalar_prefetch = 0 : i64, scratch_operands = 0 : i64, tpu.core_type = #tpu.core_type<tc>, window_params = [{transform_indices = @transform_0, window_bounds = array<i64: 1, 1, 132, 128>}, {transform_indices = @transform_1, window_bounds = array<i64: 1, 1, 1, 128>}, {pipeline_mode = #tpu.pipeline_mode<synchronous>, transform_indices = @transform_2, window_bounds = array<i64: 3, 128, 128>}, {pipeline_mode = #tpu.pipeline_mode<synchronous>, transform_indices = @transform_3, window_bounds = array<i64: 1, 128>}, {pipeline_mode = #tpu.pipeline_mode<synchronous>, transform_indices = @transform_4, window_bounds = array<i64: 1, 128>}, {pipeline_mode = #tpu.pipeline_mode<synchronous>, transform_indices = @transform_5, window_bounds = array<i64: 1, 128>}, {pipeline_mode = #tpu.pipeline_mode<synchronous>, transform_indices = @transform_6, window_bounds = array<i64: 3, 128, 128>}, {pipeline_mode = #tpu.pipeline_mode<synchronous>, transform_indices = @transform_7, window_bounds = array<i64: 1, 128>}, {pipeline_mode = #tpu.pipeline_mode<synchronous>, transform_indices = @transform_8, window_bounds = array<i64: 1, 128>}, {pipeline_mode = #tpu.pipeline_mode<synchronous>, transform_indices = @transform_9, window_bounds = array<i64: 1, 128>}, {pipeline_mode = #tpu.pipeline_mode<synchronous>, transform_indices = @transform_10, window_bounds = array<i64: 1, 128>}, {pipeline_mode = #tpu.pipeline_mode<synchronous>, transform_indices = @transform_11, window_bounds = array<i64: 1, 1>}, {transform_indices = @transform_12, window_bounds = array<i64: 1, 1, 1, 128>}]} {
    %c0 = arith.constant 0 : index
    %c0_0 = arith.constant 0 : index
    %c0_1 = arith.constant 0 : index
    %c0_2 = arith.constant 0 : index
    %0 = vector.load %arg2[%c0, %c0_0, %c0_1, %c0_2] : memref<1x1x132x128xbf16, #tpu.memory_space<vmem>>, vector<1x1x132x128xbf16>
    %1 = vector.shape_cast %0 : vector<1x1x132x128xbf16> to vector<132x128xbf16>
    %cst = arith.constant 0.000000e+00 : f32
    %2 = vector.broadcast %cst : f32 to vector<130x128xf32>
    %3 = vector.extract_strided_slice %1 {offsets = [0, 0], sizes = [130, 128], strides = [1, 1]} : vector<132x128xbf16> to vector<130x128xbf16>
    %c0_3 = arith.constant 0 : index
    %c0_4 = arith.constant 0 : index
    %c0_5 = arith.constant 0 : index
    %4 = vector.load %arg4[%c0_3, %c0_4, %c0_5] : memref<3x128x128xbf16, #tpu.memory_space<vmem>>, vector<1x128x128xbf16>
    %5 = vector.shape_cast %4 : vector<1x128x128xbf16> to vector<128x128xbf16>
    %cst_6 = arith.constant dense<0.000000e+00> : vector<130x128xf32>
    %6 = tpu.matmul %3, %5, %cst_6 {dimension_numbers = #tpu.dot_dimension_numbers<[1], [0], [0], [1], [0, 0, 1, 1], [], []>} : vector<130x128xbf16>, vector<128x128xbf16>, vector<130x128xf32> -> vector<130x128xf32>
    %7 = arith.addf %2, %6 : vector<130x128xf32>
    %8 = vector.extract_strided_slice %1 {offsets = [1, 0], sizes = [130, 128], strides = [1, 1]} : vector<132x128xbf16> to vector<130x128xbf16>
    %c1 = arith.constant 1 : index
    %c0_7 = arith.constant 0 : index
    %c0_8 = arith.constant 0 : index
    %9 = vector.load %arg4[%c1, %c0_7, %c0_8] : memref<3x128x128xbf16, #tpu.memory_space<vmem>>, vector<1x128x128xbf16>
    %10 = vector.shape_cast %9 : vector<1x128x128xbf16> to vector<128x128xbf16>
    %cst_9 = arith.constant dense<0.000000e+00> : vector<130x128xf32>
    %11 = tpu.matmul %8, %10, %cst_9 {dimension_numbers = #tpu.dot_dimension_numbers<[1], [0], [0], [1], [0, 0, 1, 1], [], []>} : vector<130x128xbf16>, vector<128x128xbf16>, vector<130x128xf32> -> vector<130x128xf32>
    %12 = arith.addf %7, %11 : vector<130x128xf32>
    %13 = vector.extract_strided_slice %1 {offsets = [2, 0], sizes = [130, 128], strides = [1, 1]} : vector<132x128xbf16> to vector<130x128xbf16>
    %c2 = arith.constant 2 : index
    %c0_10 = arith.constant 0 : index
    %c0_11 = arith.constant 0 : index
    %14 = vector.load %arg4[%c2, %c0_10, %c0_11] : memref<3x128x128xbf16, #tpu.memory_space<vmem>>, vector<1x128x128xbf16>
    %15 = vector.shape_cast %14 : vector<1x128x128xbf16> to vector<128x128xbf16>
    %cst_12 = arith.constant dense<0.000000e+00> : vector<130x128xf32>
    %16 = tpu.matmul %13, %15, %cst_12 {dimension_numbers = #tpu.dot_dimension_numbers<[1], [0], [0], [1], [0, 0, 1, 1], [], []>} : vector<130x128xbf16>, vector<128x128xbf16>, vector<130x128xf32> -> vector<130x128xf32>
    %17 = arith.addf %12, %16 : vector<130x128xf32>
    %c0_13 = arith.constant 0 : index
    %c0_14 = arith.constant 0 : index
    %18 = vector.load %arg5[%c0_13, %c0_14] : memref<1x128xf32, #tpu.memory_space<vmem>>, vector<1x128xf32>
    %19 = vector.broadcast %18 : vector<1x128xf32> to vector<130x128xf32>
    %20 = arith.addf %17, %19 : vector<130x128xf32>
    %cst_15 = arith.constant 0.000000e+00 : f32
    %21 = vector.broadcast %cst_15 : f32 to vector<130x128xf32>
    %22 = arith.maximumf %20, %21 : vector<130x128xf32>
    %cst_16 = arith.constant dense<0.000000e+00> : vector<130xf32>
    %23 = vector.multi_reduction <add>, %22, %cst_16 [1] : vector<130x128xf32> to vector<130xf32>
    %24 = vector.shape_cast %23 : vector<130xf32> to vector<130x1xf32>
    %cst_17 = arith.constant 3.125000e-02 : f32
    %25 = vector.broadcast %cst_17 : f32 to vector<130x1xf32>
    %26 = arith.mulf %24, %25 : vector<130x1xf32>
    %27 = arith.mulf %22, %22 : vector<130x128xf32>
    %cst_18 = arith.constant dense<0.000000e+00> : vector<130xf32>
    %28 = vector.multi_reduction <add>, %27, %cst_18 [1] : vector<130x128xf32> to vector<130xf32>
    %29 = vector.shape_cast %28 : vector<130xf32> to vector<130x1xf32>
    %cst_19 = arith.constant 3.125000e-02 : f32
    %30 = vector.broadcast %cst_19 : f32 to vector<130x1xf32>
    %31 = arith.mulf %29, %30 : vector<130x1xf32>
    %32 = arith.mulf %26, %26 : vector<130x1xf32>
    %33 = arith.subf %31, %32 : vector<130x1xf32>
    %cst_20 = arith.constant 0.000000e+00 : f32
    %34 = vector.broadcast %cst_20 : f32 to vector<130x1xf32>
    %35 = arith.maximumf %33, %34 : vector<130x1xf32>
    %36 = vector.broadcast %26 : vector<130x1xf32> to vector<130x128xf32>
    %37 = arith.subf %22, %36 : vector<130x128xf32>
    %cst_21 = arith.constant 9.99999974E-6 : f32
    %38 = vector.broadcast %cst_21 : f32 to vector<130x1xf32>
    %39 = arith.addf %35, %38 : vector<130x1xf32>
    %40 = math.rsqrt %39 : vector<130x1xf32>
    %41 = vector.broadcast %40 : vector<130x1xf32> to vector<130x128xf32>
    %42 = arith.mulf %37, %41 : vector<130x128xf32>
    %c0_22 = arith.constant 0 : index
    %c0_23 = arith.constant 0 : index
    %43 = vector.load %arg6[%c0_22, %c0_23] : memref<1x128xf32, #tpu.memory_space<vmem>>, vector<1x128xf32>
    %44 = vector.broadcast %43 : vector<1x128xf32> to vector<130x128xf32>
    %45 = arith.mulf %42, %44 : vector<130x128xf32>
    %c0_24 = arith.constant 0 : index
    %c0_25 = arith.constant 0 : index
    %46 = vector.load %arg7[%c0_24, %c0_25] : memref<1x128xf32, #tpu.memory_space<vmem>>, vector<1x128xf32>
    %47 = vector.broadcast %46 : vector<1x128xf32> to vector<130x128xf32>
    %48 = arith.addf %45, %47 : vector<130x128xf32>
    %c128_i32 = arith.constant 128 : i32
    %49 = arith.muli %arg1, %c128_i32 : i32
    %c2_i32 = arith.constant 2 : i32
    %50 = arith.subi %49, %c2_i32 : i32
    %c1_i32 = arith.constant 1 : i32
    %51 = arith.addi %50, %c1_i32 : i32
    %52 = tpu.iota {dimensions = array<i32: 0>} : vector<130x1xi32>
    %53 = vector.broadcast %51 : i32 to vector<130x1xi32>
    %54 = arith.addi %52, %53 : vector<130x1xi32>
    %c0_i32 = arith.constant 0 : i32
    %55 = vector.broadcast %c0_i32 : i32 to vector<130x1xi32>
    %56 = arith.cmpi sge, %54, %55 : vector<130x1xi32>
    %c16_i32 = arith.constant 16 : i32
    %57 = vector.broadcast %c16_i32 : i32 to vector<130x1xi32>
    %58 = arith.cmpi slt, %54, %57 : vector<130x1xi32>
    %59 = arith.andi %56, %58 : vector<130x1xi1>
    %cst_26 = arith.constant 0.000000e+00 : f32
    %60 = vector.shape_cast %59 : vector<130x1xi1> to vector<130x1xi1>
    %61 = vector.broadcast %60 : vector<130x1xi1> to vector<130x128xi1>
    %62 = vector.broadcast %cst_26 : f32 to vector<130x128xf32>
    %63 = arith.select %61, %48, %62 : vector<130x128xi1>, vector<130x128xf32>
    %64 = arith.truncf %63 : vector<130x128xf32> to vector<130x128xbf16>
    %cst_27 = arith.constant 0.000000e+00 : f32
    %65 = vector.broadcast %cst_27 : f32 to vector<128x128xf32>
    %66 = vector.extract_strided_slice %64 {offsets = [0, 0], sizes = [128, 128], strides = [1, 1]} : vector<130x128xbf16> to vector<128x128xbf16>
    %c0_28 = arith.constant 0 : index
    %c0_29 = arith.constant 0 : index
    %c0_30 = arith.constant 0 : index
    %67 = vector.load %arg8[%c0_28, %c0_29, %c0_30] : memref<3x128x128xbf16, #tpu.memory_space<vmem>>, vector<1x128x128xbf16>
    %68 = vector.shape_cast %67 : vector<1x128x128xbf16> to vector<128x128xbf16>
    %cst_31 = arith.constant dense<0.000000e+00> : vector<128x128xf32>
    %69 = tpu.matmul %66, %68, %cst_31 {dimension_numbers = #tpu.dot_dimension_numbers<[1], [0], [0], [1], [0, 0, 1, 1], [], []>} : vector<128x128xbf16>, vector<128x128xbf16>, vector<128x128xf32> -> vector<128x128xf32>
    %70 = arith.addf %65, %69 : vector<128x128xf32>
    %71 = vector.extract_strided_slice %64 {offsets = [1, 0], sizes = [128, 128], strides = [1, 1]} : vector<130x128xbf16> to vector<128x128xbf16>
    %c1_32 = arith.constant 1 : index
    %c0_33 = arith.constant 0 : index
    %c0_34 = arith.constant 0 : index
    %72 = vector.load %arg8[%c1_32, %c0_33, %c0_34] : memref<3x128x128xbf16, #tpu.memory_space<vmem>>, vector<1x128x128xbf16>
    %73 = vector.shape_cast %72 : vector<1x128x128xbf16> to vector<128x128xbf16>
    %cst_35 = arith.constant dense<0.000000e+00> : vector<128x128xf32>
    %74 = tpu.matmul %71, %73, %cst_35 {dimension_numbers = #tpu.dot_dimension_numbers<[1], [0], [0], [1], [0, 0, 1, 1], [], []>} : vector<128x128xbf16>, vector<128x128xbf16>, vector<128x128xf32> -> vector<128x128xf32>
    %75 = arith.addf %70, %74 : vector<128x128xf32>
    %76 = vector.extract_strided_slice %64 {offsets = [2, 0], sizes = [128, 128], strides = [1, 1]} : vector<130x128xbf16> to vector<128x128xbf16>
    %c2_36 = arith.constant 2 : index
    %c0_37 = arith.constant 0 : index
    %c0_38 = arith.constant 0 : index
    %77 = vector.load %arg8[%c2_36, %c0_37, %c0_38] : memref<3x128x128xbf16, #tpu.memory_space<vmem>>, vector<1x128x128xbf16>
    %78 = vector.shape_cast %77 : vector<1x128x128xbf16> to vector<128x128xbf16>
    %cst_39 = arith.constant dense<0.000000e+00> : vector<128x128xf32>
    %79 = tpu.matmul %76, %78, %cst_39 {dimension_numbers = #tpu.dot_dimension_numbers<[1], [0], [0], [1], [0, 0, 1, 1], [], []>} : vector<128x128xbf16>, vector<128x128xbf16>, vector<128x128xf32> -> vector<128x128xf32>
    %80 = arith.addf %75, %79 : vector<128x128xf32>
    %c0_40 = arith.constant 0 : index
    %c0_41 = arith.constant 0 : index
    %81 = vector.load %arg9[%c0_40, %c0_41] : memref<1x128xf32, #tpu.memory_space<vmem>>, vector<1x128xf32>
    %82 = vector.broadcast %81 : vector<1x128xf32> to vector<128x128xf32>
    %83 = arith.addf %80, %82 : vector<128x128xf32>
    %cst_42 = arith.constant 0.000000e+00 : f32
    %84 = vector.broadcast %cst_42 : f32 to vector<128x128xf32>
    %85 = arith.maximumf %83, %84 : vector<128x128xf32>
    %cst_43 = arith.constant dense<0.000000e+00> : vector<128xf32>
    %86 = vector.multi_reduction <add>, %85, %cst_43 [1] : vector<128x128xf32> to vector<128xf32>
    %87 = vector.shape_cast %86 : vector<128xf32> to vector<128x1xf32>
    %cst_44 = arith.constant 3.125000e-02 : f32
    %88 = vector.broadcast %cst_44 : f32 to vector<128x1xf32>
    %89 = arith.mulf %87, %88 : vector<128x1xf32>
    %90 = arith.mulf %85, %85 : vector<128x128xf32>
    %cst_45 = arith.constant dense<0.000000e+00> : vector<128xf32>
    %91 = vector.multi_reduction <add>, %90, %cst_45 [1] : vector<128x128xf32> to vector<128xf32>
    %92 = vector.shape_cast %91 : vector<128xf32> to vector<128x1xf32>
    %cst_46 = arith.constant 3.125000e-02 : f32
    %93 = vector.broadcast %cst_46 : f32 to vector<128x1xf32>
    %94 = arith.mulf %92, %93 : vector<128x1xf32>
    %95 = arith.mulf %89, %89 : vector<128x1xf32>
    %96 = arith.subf %94, %95 : vector<128x1xf32>
    %cst_47 = arith.constant 0.000000e+00 : f32
    %97 = vector.broadcast %cst_47 : f32 to vector<128x1xf32>
    %98 = arith.maximumf %96, %97 : vector<128x1xf32>
    %99 = vector.broadcast %89 : vector<128x1xf32> to vector<128x128xf32>
    %100 = arith.subf %85, %99 : vector<128x128xf32>
    %cst_48 = arith.constant 9.99999974E-6 : f32
    %101 = vector.broadcast %cst_48 : f32 to vector<128x1xf32>
    %102 = arith.addf %98, %101 : vector<128x1xf32>
    %103 = math.rsqrt %102 : vector<128x1xf32>
    %104 = vector.broadcast %103 : vector<128x1xf32> to vector<128x128xf32>
    %105 = arith.mulf %100, %104 : vector<128x128xf32>
    %c0_49 = arith.constant 0 : index
    %c0_50 = arith.constant 0 : index
    %106 = vector.load %arg10[%c0_49, %c0_50] : memref<1x128xf32, #tpu.memory_space<vmem>>, vector<1x128xf32>
    %107 = vector.broadcast %106 : vector<1x128xf32> to vector<128x128xf32>
    %108 = arith.mulf %105, %107 : vector<128x128xf32>
    %c0_51 = arith.constant 0 : index
    %c0_52 = arith.constant 0 : index
    %109 = vector.load %arg11[%c0_51, %c0_52] : memref<1x128xf32, #tpu.memory_space<vmem>>, vector<1x128xf32>
    %110 = vector.broadcast %109 : vector<1x128xf32> to vector<128x128xf32>
    %111 = arith.addf %108, %110 : vector<128x128xf32>
    %c128_i32_53 = arith.constant 128 : i32
    %112 = arith.muli %arg1, %c128_i32_53 : i32
    %c2_i32_54 = arith.constant 2 : i32
    %113 = arith.subi %112, %c2_i32_54 : i32
    %c2_i32_55 = arith.constant 2 : i32
    %114 = arith.addi %113, %c2_i32_55 : i32
    %115 = tpu.iota {dimensions = array<i32: 0>} : vector<128x1xi32>
    %116 = vector.broadcast %114 : i32 to vector<128x1xi32>
    %117 = arith.addi %115, %116 : vector<128x1xi32>
    %c0_i32_56 = arith.constant 0 : i32
    %118 = vector.broadcast %c0_i32_56 : i32 to vector<128x1xi32>
    %119 = arith.cmpi sge, %117, %118 : vector<128x1xi32>
    %c16_i32_57 = arith.constant 16 : i32
    %120 = vector.broadcast %c16_i32_57 : i32 to vector<128x1xi32>
    %121 = arith.cmpi slt, %117, %120 : vector<128x1xi32>
    %122 = arith.andi %119, %121 : vector<128x1xi1>
    %cst_58 = arith.constant 0.000000e+00 : f32
    %123 = vector.shape_cast %122 : vector<128x1xi1> to vector<128x1xi1>
    %124 = vector.broadcast %123 : vector<128x1xi1> to vector<128x128xi1>
    %125 = vector.broadcast %cst_58 : f32 to vector<128x128xf32>
    %126 = arith.select %124, %111, %125 : vector<128x128xi1>, vector<128x128xf32>
    %127 = arith.truncf %126 : vector<128x128xf32> to vector<128x128xbf16>
    %c0_59 = arith.constant 0 : index
    %c0_60 = arith.constant 0 : index
    %128 = vector.load %arg12[%c0_59, %c0_60] : memref<1x128xbf16, #tpu.memory_space<vmem>>, vector<1x128xbf16>
    %cst_61 = arith.constant dense<0.000000e+00> : vector<1x128xf32>
    %129 = tpu.matmul %128, %127, %cst_61 {dimension_numbers = #tpu.dot_dimension_numbers<[1], [1], [0], [0], [0, 0, 1, 0], [], []>} : vector<1x128xbf16>, vector<128x128xbf16>, vector<1x128xf32> -> vector<1x128xf32>
    %c0_62 = arith.constant 0 : index
    %c0_63 = arith.constant 0 : index
    %130 = vector.load %arg13[%c0_62, %c0_63] : memref<1x1xf32, #tpu.memory_space<vmem>>, vector<1x1xf32>
    %131 = vector.broadcast %130 : vector<1x1xf32> to vector<1x128xf32>
    %132 = arith.addf %129, %131 : vector<1x128xf32>
    %c0_64 = arith.constant 0 : index
    %c0_65 = arith.constant 0 : index
    %c0_66 = arith.constant 0 : index
    %c0_67 = arith.constant 0 : index
    %133 = vector.load %arg3[%c0_64, %c0_65, %c0_66, %c0_67] : memref<1x1x1x128xf32, #tpu.memory_space<vmem>>, vector<1x1x1x128xf32>
    %134 = vector.shape_cast %133 : vector<1x1x1x128xf32> to vector<1x128xf32>
    %135 = arith.mulf %132, %134 : vector<1x128xf32>
    %c0_68 = arith.constant 0 : index
    %c0_69 = arith.constant 0 : index
    %c0_70 = arith.constant 0 : index
    %c0_71 = arith.constant 0 : index
    %136 = vector.load %arg14[%c0_68, %c0_69, %c0_70, %c0_71] : memref<1x1x1x128xf32, #tpu.memory_space<vmem>>, vector<1x1x1x128xf32>
    %137 = vector.shape_cast %136 : vector<1x1x1x128xf32> to vector<1x128xf32>
    %138 = vector.shape_cast %135 : vector<1x128xf32> to vector<1x1x1x128xf32>
    tpu.vector_store %arg14[%c0_68, %c0_69, %c0_70, %c0_71], %138 {strides = array<i32>} : memref<1x1x1x128xf32, #tpu.memory_space<vmem>>, vector<1x1x1x128xf32>,
    return
  }
  func.func @transform_0(%arg0: i32, %arg1: i32) -> (i32, i32, i32, i32) {
    %c0_i32 = arith.constant 0 : i32
    %c0_i32_0 = arith.constant 0 : i32
    %c0_i32_1 = arith.constant 0 : i32
    return %arg0, %arg1, %c0_i32, %c0_i32_0 : i32, i32, i32, i32
  }
  func.func @transform_1(%arg0: i32, %arg1: i32) -> (i32, i32, i32, i32) {
    %c0_i32 = arith.constant 0 : i32
    %c0_i32_0 = arith.constant 0 : i32
    %c0_i32_1 = arith.constant 0 : i32
    return %arg0, %arg1, %c0_i32, %c0_i32_0 : i32, i32, i32, i32
  }
  func.func @transform_2(%arg0: i32, %arg1: i32) -> (i32, i32, i32) {
    %c0_i32 = arith.constant 0 : i32
    %c0_i32_0 = arith.constant 0 : i32
    %c0_i32_1 = arith.constant 0 : i32
    %c0_i32_2 = arith.constant 0 : i32
    return %c0_i32, %c0_i32_0, %c0_i32_1 : i32, i32, i32
  }
  func.func @transform_3(%arg0: i32, %arg1: i32) -> (i32, i32) {
    %c0_i32 = arith.constant 0 : i32
    %c0_i32_0 = arith.constant 0 : i32
    %c0_i32_1 = arith.constant 0 : i32
    return %c0_i32, %c0_i32_0 : i32, i32
  }
  func.func @transform_4(%arg0: i32, %arg1: i32) -> (i32, i32) {
    %c0_i32 = arith.constant 0 : i32
    %c0_i32_0 = arith.constant 0 : i32
    %c0_i32_1 = arith.constant 0 : i32
    return %c0_i32, %c0_i32_0 : i32, i32
  }
  func.func @transform_5(%arg0: i32, %arg1: i32) -> (i32, i32) {
    %c0_i32 = arith.constant 0 : i32
    %c0_i32_0 = arith.constant 0 : i32
    %c0_i32_1 = arith.constant 0 : i32
    return %c0_i32, %c0_i32_0 : i32, i32
  }
  func.func @transform_6(%arg0: i32, %arg1: i32) -> (i32, i32, i32) {
    %c0_i32 = arith.constant 0 : i32
    %c0_i32_0 = arith.constant 0 : i32
    %c0_i32_1 = arith.constant 0 : i32
    %c0_i32_2 = arith.constant 0 : i32
    return %c0_i32, %c0_i32_0, %c0_i32_1 : i32, i32, i32
  }
  func.func @transform_7(%arg0: i32, %arg1: i32) -> (i32, i32) {
    %c0_i32 = arith.constant 0 : i32
    %c0_i32_0 = arith.constant 0 : i32
    %c0_i32_1 = arith.constant 0 : i32
    return %c0_i32, %c0_i32_0 : i32, i32
  }
  func.func @transform_8(%arg0: i32, %arg1: i32) -> (i32, i32) {
    %c0_i32 = arith.constant 0 : i32
    %c0_i32_0 = arith.constant 0 : i32
    %c0_i32_1 = arith.constant 0 : i32
    return %c0_i32, %c0_i32_0 : i32, i32
  }
  func.func @transform_9(%arg0: i32, %arg1: i32) -> (i32, i32) {
    %c0_i32 = arith.constant 0 : i32
    %c0_i32_0 = arith.constant 0 : i32
    %c0_i32_1 = arith.constant 0 : i32
    return %c0_i32, %c0_i32_0 : i32, i32
  }
  func.func @transform_10(%arg0: i32, %arg1: i32) -> (i32, i32) {
    %c0_i32 = arith.constant 0 : i32
    %c0_i32_0 = arith.constant 0 : i32
    %c0_i32_1 = arith.constant 0 : i32
    return %c0_i32, %c0_i32_0 : i32, i32
  }
  func.func @transform_11(%arg0: i32, %arg1: i32) -> (i32, i32) {
    %c0_i32 = arith.constant 0 : i32
    %c0_i32_0 = arith.constant 0 : i32
    %c0_i32_1 = arith.constant 0 : i32
    return %c0_i32, %c0_i32_0 : i32, i32
  }
  func.func @transform_12(%arg0: i32, %arg1: i32) -> (i32, i32, i32, i32) {
    %c0_i32 = arith.constant 0 : i32
    %c0_i32_0 = arith.constant 0 : i32
    %c0_i32_1 = arith.constant 0 : i32
    return %arg0, %arg1, %c0_i32, %c0_i32_0 : i32, i32, i32, i32
  }
}

</mosaic_0001>

<llo_original>
// kernel: tpu_custom_call.1
$region0: #{tpu_custom_call.1}
  #allocation0 [shape = 'u32[]', space=smem, size = 0x4, offset = 0x4, fixed_abs, tag = 'smem constant byte address 0x4 - core index']
  #allocation1 [shape = 'u32[144,128]{1,0:T(1,128)}', space=vmem, size = 0x12000, scoped, tag = 'internal scratch']
  #allocation2 [shape = 'f32[1,1]{1,0:T(1,128)S(1)}', space=vmem, size = 0x200, scoped, tag = 'scoped memory for tpu_custom_call.1']
  %s0 = inlined_call_operand.vmem [shape: bf16[2,1,132,128], index: 0, kind: input, shape index: {}]
  %s1 = inlined_call_operand.vmem [shape: f32[2,1,1,128], index: 1, kind: input, shape index: {}]
  %s2 = inlined_call_operand.vmem [shape: bf16[3,128,128], index: 2, kind: input, shape index: {}]
  %s3 = inlined_call_operand.vmem [shape: f32[1,128], index: 3, kind: input, shape index: {}]
  %s4 = inlined_call_operand.vmem [shape: f32[1,128], index: 4, kind: input, shape index: {}]
  %s5 = inlined_call_operand.vmem [shape: f32[1,128], index: 5, kind: input, shape index: {}]
  %s6 = inlined_call_operand.hbm [shape: bf16[3,128,128], index: 6, kind: input, shape index: {}]
  %s7 = inlined_call_operand.vmem [shape: f32[1,128], index: 7, kind: input, shape index: {}]
  %s8 = inlined_call_operand.vmem [shape: f32[1,128], index: 8, kind: input, shape index: {}]
  %s9 = inlined_call_operand.vmem [shape: f32[1,128], index: 9, kind: input, shape index: {}]
  %s10 = inlined_call_operand.vmem [shape: bf16[1,128], index: 10, kind: input, shape index: {}]
  %s11 = inlined_call_operand.<no memory space> [shape: f32[1,1], index: 11, kind: input, shape index: {}]
  %s12 = inlined_call_operand.hbm [shape: f32[2,1,1,128], index: 12, kind: output, shape index: {}]
  %s13 = sld [smem:[#allocation0]]
  $region85: #{tpu_custom_call.1} parent=0
    _
  %s15 = ssub.s32 1, %s13
  %s16 = scalar_select 0, %s15, %s13
  %v17 = vstv %s11
  %18 = vst [vmem:[#allocation2] sm:$0x1] %v17
  $region1: #{tpu_custom_call.1} parent=0
    #allocation3 [shape = 'u8[98304]{0}', space=vmem, size = 0x18000, scoped, tag = 'input window, operand 6, single buffered']
    #allocation4 [shape = 's32[2]{0}', space=sflag, size = 0x8, scoped, tag = 'scoped memory for tpu_custom_call.1']
    #allocation5 [shape = 's32[2]{0}', space=sflag, size = 0x8, scoped, tag = 'scoped memory for tpu_custom_call.1']
    #allocation6 [shape = 'u8[1024]{0}', space=vmem, size = 0x400, scoped, tag = 'output window, operand 0']
    %19 = vsyncpa [#allocation4], 0
    %20 = vsyncpa [#allocation5], 0
    %s21 = scalar_lea.sflag [#allocation5], 1
    %22 = vsyncpa %s21, 0
    loop: start=0, step=1, limit=4
    $region2: #{tpu_custom_call.1} parent=1 // loop_pre_header
      _
    $region3: #{tpu_custom_call.1} parent=1 // loop_header
      %s24 = sphi 0, %s28
      %p25 = scmp.ge.s32.totalorder %s24, 4
      %s31 = sphi 0, %s43
      %s32 = sphi 0, %s39
      %s33 = sphi 0, %s31
      %s34 = sphi 0, %s32
      %s35 = sphi 0, %s33
      %s36 = sphi 0, %s34
      %s48 = sphi 0, %s50
      %s51 = sphi 0, %s48
      %s52 = sphi 0, %s51
      %s68 = sphi 0, %s52
      %s76 = sphi 0, %s78
      %s79 = sphi 0, %s76
      %s80 = sphi 0, %s79
      %s96 = sphi 0, %s80
      %s100 = sphi 0, %s100
      %s102 = sphi 0, %s100
      %s103 = sphi 0, %s102
      %s117 = sphi 0, %s103
      %s121 = sphi 0, %s121
      %s123 = sphi 0, %s121
      %s124 = sphi 0, %s123
      %s138 = sphi 0, %s124
      %s142 = sphi 0, %s142
      %s144 = sphi 0, %s142
      %s145 = sphi 0, %s144
      %s159 = sphi 0, %s145
      %s163 = sphi 0, %s163
      %s165 = sphi 0, %s163
      %s166 = sphi 0, %s165
      %s180 = sphi 0, %s166
      %s184 = sphi 0, %s184
      %s186 = sphi 0, %s184
      %s187 = sphi 0, %s186
      %s201 = sphi 0, %s187
      %s205 = sphi 0, %s205
      %s207 = sphi 0, %s205
      %s208 = sphi 0, %s207
      %s222 = sphi 0, %s208
      %s226 = sphi 0, %s226
      %s228 = sphi 0, %s226
      %s229 = sphi 0, %s228
      %s243 = sphi 0, %s229
      %s247 = sphi 0, %s247
      %s249 = sphi 0, %s247
      %s250 = sphi 0, %s249
      %s264 = sphi 0, %s250
      %s268 = sphi 0, %s268
      %s270 = sphi 0, %s268
      %s271 = sphi 0, %s270
      %s285 = sphi 0, %s271
      %s289 = sphi 0, %s289
      %s291 = sphi 0, %s289
      %s292 = sphi 0, %s291
      %s306 = sphi 0, %s292
      %s314 = sphi 0, %s316
      %s317 = sphi 0, %s314
      %s318 = sphi 0, %s317
      %s334 = sphi 0, %s318
    $region4: #{tpu_custom_call.1} parent=1 // loop_header_branch
      %27 = sbr.rel (%p25) target = $region8
    $region5: #{tpu_custom_call.1} parent=1 // loop_body
      %s29 = ssub.s32 %s24, 1
      %s30 = ssub.s32 %s24, 2
      %s37 = sadd.s32 1, %s32
      %p38 = scmp.ge.s32.totalorder %s37, 1
      %s39 = scalar_select %p38, 0, %s37
      %s40 = sadd.s32 1, %s31
      %s41 = scalar_select %p38, %s40, %s31
      %p42 = scmp.ge.s32.totalorder %s41, 2
      %s43 = scalar_select %p42, 0, %s41
      %s44 = ssub.s32 %s31, %s43
      %s45 = ssub.s32 %s32, %s39
      %s46 = sor.u32 %s44, %s45
      %p47 = scmp.eq.s32.totalorder %s46, 0
      %s49 = sadd.s32 %s48, 1
      %s50 = scalar_select %p47, %s48, %s49
      %p53 = pneg %p47
      %p54 = scmp.eq.s32.totalorder %s24, 1
      %p55 = por %p53, %p54
      %p56 = scmp.ne.s32.totalorder %s48, %s51
      %p57 = scmp.eq.s32.totalorder %s24, 0
      %p58 = por %p56, %p57
      %p59 = scmp.ne.s32.totalorder %s48, %s51
      %p60 = scmp.eq.s32.totalorder %s29, 1
      %p61 = por %p59, %p60
      %p62 = scmp.ne.s32.totalorder %s51, %s52
      %p63 = scmp.eq.s32.totalorder %s29, 0
      %p64 = por %p62, %p63
      %p65 = scmp.ne.s32.totalorder %s51, %s52
      %p66 = scmp.eq.s32.totalorder %s30, 1
      %p67 = por %p65, %p66
      %p69 = scmp.ne.s32.totalorder %s52, %s68
      %p70 = scmp.eq.s32.totalorder %s30, 0
      %p71 = por %p69, %p70
      %s72 = ssub.s32 %s31, %s43
      %s73 = ssub.s32 %s32, %s39
      %s74 = sor.u32 %s72, %s73
      %p75 = scmp.eq.s32.totalorder %s74, 0
      %s77 = sadd.s32 %s76, 1
      %s78 = scalar_select %p75, %s76, %s77
      %p81 = pneg %p75
      %p82 = scmp.eq.s32.totalorder %s24, 1
      %p83 = por %p81, %p82
      %p84 = scmp.ne.s32.totalorder %s76, %s79
      %p85 = scmp.eq.s32.totalorder %s24, 0
      %p86 = por %p84, %p85
      %p87 = scmp.ne.s32.totalorder %s76, %s79
      %p88 = scmp.eq.s32.totalorder %s29, 1
      %p89 = por %p87, %p88
      %p90 = scmp.ne.s32.totalorder %s79, %s80
      %p91 = scmp.eq.s32.totalorder %s29, 0
      %p92 = por %p90, %p91
      %p93 = scmp.ne.s32.totalorder %s79, %s80
      %p94 = scmp.eq.s32.totalorder %s30, 1
      %p95 = por %p93, %p94
      %p97 = scmp.ne.s32.totalorder %s80, %s96
      %p98 = scmp.eq.s32.totalorder %s30, 0
      %p99 = por %p97, %p98
      %s101 = sadd.s32 %s100, 1
      %p104 = scmp.eq.s32.totalorder %s24, 1
      %p105 = scmp.ne.s32.totalorder %s100, %s102
      %p106 = scmp.eq.s32.totalorder %s24, 0
      %p107 = por %p105, %p106
      %p108 = scmp.ne.s32.totalorder %s100, %s102
      %p109 = scmp.eq.s32.totalorder %s29, 1
      %p110 = por %p108, %p109
      %p111 = scmp.ne.s32.totalorder %s102, %s103
      %p112 = scmp.eq.s32.totalorder %s29, 0
      %p113 = por %p111, %p112
      %p114 = scmp.ne.s32.totalorder %s102, %s103
      %p115 = scmp.eq.s32.totalorder %s30, 1
      %p116 = por %p114, %p115
      %p118 = scmp.ne.s32.totalorder %s103, %s117
      %p119 = scmp.eq.s32.totalorder %s30, 0
      %p120 = por %p118, %p119
      %s122 = sadd.s32 %s121, 1
      %p125 = scmp.eq.s32.totalorder %s24, 1
      %p126 = scmp.ne.s32.totalorder %s121, %s123
      %p127 = scmp.eq.s32.totalorder %s24, 0
      %p128 = por %p126, %p127
      %p129 = scmp.ne.s32.totalorder %s121, %s123
      %p130 = scmp.eq.s32.totalorder %s29, 1
      %p131 = por %p129, %p130
      %p132 = scmp.ne.s32.totalorder %s123, %s124
      %p133 = scmp.eq.s32.totalorder %s29, 0
      %p134 = por %p132, %p133
      %p135 = scmp.ne.s32.totalorder %s123, %s124
      %p136 = scmp.eq.s32.totalorder %s30, 1
      %p137 = por %p135, %p136
      %p139 = scmp.ne.s32.totalorder %s124, %s138
      %p140 = scmp.eq.s32.totalorder %s30, 0
      %p141 = por %p139, %p140
      %s143 = sadd.s32 %s142, 1
      %p146 = scmp.eq.s32.totalorder %s24, 1
      %p147 = scmp.ne.s32.totalorder %s142, %s144
      %p148 = scmp.eq.s32.totalorder %s24, 0
      %p149 = por %p147, %p148
      %p150 = scmp.ne.s32.totalorder %s142, %s144
      %p151 = scmp.eq.s32.totalorder %s29, 1
      %p152 = por %p150, %p151
      %p153 = scmp.ne.s32.totalorder %s144, %s145
      %p154 = scmp.eq.s32.totalorder %s29, 0
      %p155 = por %p153, %p154
      %p156 = scmp.ne.s32.totalorder %s144, %s145
      %p157 = scmp.eq.s32.totalorder %s30, 1
      %p158 = por %p156, %p157
      %p160 = scmp.ne.s32.totalorder %s145, %s159
      %p161 = scmp.eq.s32.totalorder %s30, 0
      %p162 = por %p160, %p161
      %s164 = sadd.s32 %s163, 1
      %p167 = scmp.eq.s32.totalorder %s24, 1
      %p168 = scmp.ne.s32.totalorder %s163, %s165
      %p169 = scmp.eq.s32.totalorder %s24, 0
      %p170 = por %p168, %p169
      %p171 = scmp.ne.s32.totalorder %s163, %s165
      %p172 = scmp.eq.s32.totalorder %s29, 1
      %p173 = por %p171, %p172
      %p174 = scmp.ne.s32.totalorder %s165, %s166
      %p175 = scmp.eq.s32.totalorder %s29, 0
      %p176 = por %p174, %p175
      %p177 = scmp.ne.s32.totalorder %s165, %s166
      %p178 = scmp.eq.s32.totalorder %s30, 1
      %p179 = por %p177, %p178
      %p181 = scmp.ne.s32.totalorder %s166, %s180
      %p182 = scmp.eq.s32.totalorder %s30, 0
      %p183 = por %p181, %p182
      %s185 = sadd.s32 %s184, 1
      %p188 = scmp.eq.s32.totalorder %s24, 1
      %p189 = scmp.ne.s32.totalorder %s184, %s186
      %p190 = scmp.eq.s32.totalorder %s24, 0
      %p191 = por %p189, %p190
      %p192 = scmp.ne.s32.totalorder %s184, %s186
      %p193 = scmp.eq.s32.totalorder %s29, 1
      %p194 = por %p192, %p193
      %p195 = scmp.ne.s32.totalorder %s186, %s187
      %p196 = scmp.eq.s32.totalorder %s29, 0
      %p197 = por %p195, %p196
      %p198 = scmp.ne.s32.totalorder %s186, %s187
      %p199 = scmp.eq.s32.totalorder %s30, 1
      %p200 = por %p198, %p199
      %p202 = scmp.ne.s32.totalorder %s187, %s201
      %p203 = scmp.eq.s32.totalorder %s30, 0
      %p204 = por %p202, %p203
      %s206 = sadd.s32 %s205, 1
      %p209 = scmp.eq.s32.totalorder %s24, 1
      %p210 = scmp.ne.s32.totalorder %s205, %s207
      %p211 = scmp.eq.s32.totalorder %s24, 0
      %p212 = por %p210, %p211
      %p213 = scmp.ne.s32.totalorder %s205, %s207
      %p214 = scmp.eq.s32.totalorder %s29, 1
      %p215 = por %p213, %p214
      %p216 = scmp.ne.s32.totalorder %s207, %s208
      %p217 = scmp.eq.s32.totalorder %s29, 0
      %p218 = por %p216, %p217
      %p219 = scmp.ne.s32.totalorder %s207, %s208
      %p220 = scmp.eq.s32.totalorder %s30, 1
      %p221 = por %p219, %p220
      %p223 = scmp.ne.s32.totalorder %s208, %s222
      %p224 = scmp.eq.s32.totalorder %s30, 0
      %p225 = por %p223, %p224
      %s227 = sadd.s32 %s226, 1
      %p230 = scmp.eq.s32.totalorder %s24, 1
      %p231 = scmp.ne.s32.totalorder %s226, %s228
      %p232 = scmp.eq.s32.totalorder %s24, 0
      %p233 = por %p231, %p232
      %p234 = scmp.ne.s32.totalorder %s226, %s228
      %p235 = scmp.eq.s32.totalorder %s29, 1
      %p236 = por %p234, %p235
      %p237 = scmp.ne.s32.totalorder %s228, %s229
      %p238 = scmp.eq.s32.totalorder %s29, 0
      %p239 = por %p237, %p238
      %p240 = scmp.ne.s32.totalorder %s228, %s229
      %p241 = scmp.eq.s32.totalorder %s30, 1
      %p242 = por %p240, %p241
      %p244 = scmp.ne.s32.totalorder %s229, %s243
      %p245 = scmp.eq.s32.totalorder %s30, 0
      %p246 = por %p244, %p245
      %s248 = sadd.s32 %s247, 1
      %p251 = scmp.eq.s32.totalorder %s24, 1
      %p252 = scmp.ne.s32.totalorder %s247, %s249
      %p253 = scmp.eq.s32.totalorder %s24, 0
      %p254 = por %p252, %p253
      %p255 = scmp.ne.s32.totalorder %s247, %s249
      %p256 = scmp.eq.s32.totalorder %s29, 1
      %p257 = por %p255, %p256
      %p258 = scmp.ne.s32.totalorder %s249, %s250
      %p259 = scmp.eq.s32.totalorder %s29, 0
      %p260 = por %p258, %p259
      %p261 = scmp.ne.s32.totalorder %s249, %s250
      %p262 = scmp.eq.s32.totalorder %s30, 1
      %p263 = por %p261, %p262
      %p265 = scmp.ne.s32.totalorder %s250, %s264
      %p266 = scmp.eq.s32.totalorder %s30, 0
      %p267 = por %p265, %p266
      %s269 = sadd.s32 %s268, 1
      %p272 = scmp.eq.s32.totalorder %s24, 1
      %p273 = scmp.ne.s32.totalorder %s268, %s270
      %p274 = scmp.eq.s32.totalorder %s24, 0
      %p275 = por %p273, %p274
      %p276 = scmp.ne.s32.totalorder %s268, %s270
      %p277 = scmp.eq.s32.totalorder %s29, 1
      %p278 = por %p276, %p277
      %p279 = scmp.ne.s32.totalorder %s270, %s271
      %p280 = scmp.eq.s32.totalorder %s29, 0
      %p281 = por %p279, %p280
      %p282 = scmp.ne.s32.totalorder %s270, %s271
      %p283 = scmp.eq.s32.totalorder %s30, 1
      %p284 = por %p282, %p283
      %p286 = scmp.ne.s32.totalorder %s271, %s285
      %p287 = scmp.eq.s32.totalorder %s30, 0
      %p288 = por %p286, %p287
      %s290 = sadd.s32 %s289, 1
      %p293 = scmp.eq.s32.totalorder %s24, 1
      %p294 = scmp.ne.s32.totalorder %s289, %s291
      %p295 = scmp.eq.s32.totalorder %s24, 0
      %p296 = por %p294, %p295
      %p297 = scmp.ne.s32.totalorder %s289, %s291
      %p298 = scmp.eq.s32.totalorder %s29, 1
      %p299 = por %p297, %p298
      %p300 = scmp.ne.s32.totalorder %s291, %s292
      %p301 = scmp.eq.s32.totalorder %s29, 0
      %p302 = por %p300, %p301
      %p303 = scmp.ne.s32.totalorder %s291, %s292
      %p304 = scmp.eq.s32.totalorder %s30, 1
      %p305 = por %p303, %p304
      %p307 = scmp.ne.s32.totalorder %s292, %s306
      %p308 = scmp.eq.s32.totalorder %s30, 0
      %p309 = por %p307, %p308
      %s310 = ssub.s32 %s31, %s43
      %s311 = ssub.s32 %s32, %s39
      %s312 = sor.u32 %s310, %s311
      %p313 = scmp.eq.s32.totalorder %s312, 0
      %s315 = sadd.s32 %s314, 1
      %s316 = scalar_select %p313, %s314, %s315
      %p319 = pneg %p313
      %p320 = scmp.eq.s32.totalorder %s24, 1
      %p321 = por %p319, %p320
      %p322 = scmp.ne.s32.totalorder %s314, %s317
      %p323 = scmp.eq.s32.totalorder %s24, 0
      %p324 = por %p322, %p323
      %p325 = scmp.ne.s32.totalorder %s314, %s317
      %p326 = scmp.eq.s32.totalorder %s29, 1
      %p327 = por %p325, %p326
      %p328 = scmp.ne.s32.totalorder %s317, %s318
      %p329 = scmp.eq.s32.totalorder %s29, 0
      %p330 = por %p328, %p329
      %p331 = scmp.ne.s32.totalorder %s317, %s318
      %p332 = scmp.eq.s32.totalorder %s30, 1
      %p333 = por %p331, %p332
      %p335 = scmp.ne.s32.totalorder %s318, %s334
      %p336 = scmp.eq.s32.totalorder %s30, 0
      %p337 = por %p335, %p336
      %p338 = scmp.le.s32.totalorder 1, %s24
      %p339 = scmp.lt.s32.totalorder %s24, 3
      %p340 = pnand %p338, %p339
      %p341 = pneg %p340
      // Predicated region
      $region9: #{tpu_custom_call.1} parent=5 // pred_check
        _
      $region10: #{tpu_custom_call.1} parent=5 // pred_check_branch
        %343 = sbr.rel (%p340) target = $region12
      $region11: #{tpu_custom_call.1} parent=5 // pred_region
        %s344 = ssub.s32 %s24, 1
        // Predicated region
        $region13: #{tpu_custom_call.1} parent=11 // pred_check
          %p345 = pneg %p113
        $region14: #{tpu_custom_call.1} parent=11 // pred_check_branch
          %347 = sbr.rel (%p345) target = $region16
        $region15: #{tpu_custom_call.1} parent=11 // pred_region
          _
        $region16: #{tpu_custom_call.1} parent=11 // pred_fallthru
          _
        // Predicated region
        $region17: #{tpu_custom_call.1} parent=11 // pred_check
          %p348 = pneg %p134
        $region18: #{tpu_custom_call.1} parent=11 // pred_check_branch
          %350 = sbr.rel (%p348) target = $region20
        $region19: #{tpu_custom_call.1} parent=11 // pred_region
          _
        $region20: #{tpu_custom_call.1} parent=11 // pred_fallthru
          _
        // Predicated region
        $region21: #{tpu_custom_call.1} parent=11 // pred_check
          %p351 = pneg %p155
        $region22: #{tpu_custom_call.1} parent=11 // pred_check_branch
          %353 = sbr.rel (%p351) target = $region24
        $region23: #{tpu_custom_call.1} parent=11 // pred_region
          _
        $region24: #{tpu_custom_call.1} parent=11 // pred_fallthru
          _
        // Predicated region
        $region25: #{tpu_custom_call.1} parent=11 // pred_check
          %p354 = pneg %p176
        $region26: #{tpu_custom_call.1} parent=11 // pred_check_branch
          %356 = sbr.rel (%p354) target = $region28
        $region27: #{tpu_custom_call.1} parent=11 // pred_region
          _
        $region28: #{tpu_custom_call.1} parent=11 // pred_fallthru
          _
        // Predicated region
        $region29: #{tpu_custom_call.1} parent=11 // pred_check
          %p357 = pneg %p197
        $region30: #{tpu_custom_call.1} parent=11 // pred_check_branch
          %359 = sbr.rel (%p357) target = $region32
        $region31: #{tpu_custom_call.1} parent=11 // pred_region
          %s361 = ssub.s32 3072, 3072
          %362 = vsyncadd [#allocation4], %s361
          %s363 = sshll.u32 [#allocation3], 4
          %s364 = int_to_ptr.vmem [resolvable:$true] %s363
          %369 = dma.hbm_to_vmem [thread:$0]  %s6, 3072, %s364, [#allocation4], 64, 64, 4
        $region32: #{tpu_custom_call.1} parent=11 // pred_fallthru
          _
        // Predicated region
        $region33: #{tpu_custom_call.1} parent=11 // pred_check
          %p370 = pneg %p218
        $region34: #{tpu_custom_call.1} parent=11 // pred_check_branch
          %372 = sbr.rel (%p370) target = $region36
        $region35: #{tpu_custom_call.1} parent=11 // pred_region
          _
        $region36: #{tpu_custom_call.1} parent=11 // pred_fallthru
          _
        // Predicated region
        $region37: #{tpu_custom_call.1} parent=11 // pred_check
          %p373 = pneg %p239
        $region38: #{tpu_custom_call.1} parent=11 // pred_check_branch
          %375 = sbr.rel (%p373) target = $region40
        $region39: #{tpu_custom_call.1} parent=11 // pred_region
          _
        $region40: #{tpu_custom_call.1} parent=11 // pred_fallthru
          _
        // Predicated region
        $region41: #{tpu_custom_call.1} parent=11 // pred_check
          %p376 = pneg %p260
        $region42: #{tpu_custom_call.1} parent=11 // pred_check_branch
          %378 = sbr.rel (%p376) target = $region44
        $region43: #{tpu_custom_call.1} parent=11 // pred_region
          _
        $region44: #{tpu_custom_call.1} parent=11 // pred_fallthru
          _
        // Predicated region
        $region45: #{tpu_custom_call.1} parent=11 // pred_check
          %p379 = pneg %p281
        $region46: #{tpu_custom_call.1} parent=11 // pred_check_branch
          %381 = sbr.rel (%p379) target = $region48
        $region47: #{tpu_custom_call.1} parent=11 // pred_region
          _
        $region48: #{tpu_custom_call.1} parent=11 // pred_fallthru
          _
        // Predicated region
        $region49: #{tpu_custom_call.1} parent=11 // pred_check
          %p382 = pneg %p302
        $region50: #{tpu_custom_call.1} parent=11 // pred_check_branch
          %384 = sbr.rel (%p382) target = $region52
        $region51: #{tpu_custom_call.1} parent=11 // pred_region
          _
        $region52: #{tpu_custom_call.1} parent=11 // pred_fallthru
          _
      $region12: #{tpu_custom_call.1} parent=5 // pred_fallthru
        _
      %p385 = scmp.lt.s32.totalorder %s24, 2
      // Predicated region
      $region53: #{tpu_custom_call.1} parent=5 // pred_check
        %p386 = pneg %p385
      $region54: #{tpu_custom_call.1} parent=5 // pred_check_branch
        %388 = sbr.rel (%p386) target = $region56
      $region55: #{tpu_custom_call.1} parent=5 // pred_region
        // Predicated region
        $region57: #{tpu_custom_call.1} parent=55 // pred_check
          %p389 = pneg %p58
        $region58: #{tpu_custom_call.1} parent=55 // pred_check_branch
          %391 = sbr.rel (%p389) target = $region60
        $region59: #{tpu_custom_call.1} parent=55 // pred_region
          %p392 = scmp.lt.s32.totalorder %s31, 1
          %s393 = scalar_select %p392, %s31, 1
          %p394 = scmp.lt.s32.totalorder %s32, 0
          %s395 = scalar_select %p394, %s32, 0
          %s396 = smul.addr %s395, 17
          %s397 = smul.addr %s393, 17
          %s398 = sadd.s32 %s396, %s397
          %s399 = smul.addr %s398, 4
          %s400 = scalar_lea.vmem %s0, %s399
        $region60: #{tpu_custom_call.1} parent=55 // pred_fallthru
          _
        // Predicated region
        $region61: #{tpu_custom_call.1} parent=55 // pred_check
          %p401 = pneg %p86
        $region62: #{tpu_custom_call.1} parent=55 // pred_check_branch
          %403 = sbr.rel (%p401) target = $region64
        $region63: #{tpu_custom_call.1} parent=55 // pred_region
          %p404 = scmp.lt.s32.totalorder %s31, 1
          %s405 = scalar_select %p404, %s31, 1
          %p406 = scmp.lt.s32.totalorder %s32, 0
          %s407 = scalar_select %p406, %s32, 0
          %s408 = sadd.s32 %s407, %s405
          %s409 = scalar_lea.vmem %s1, %s408
        $region64: #{tpu_custom_call.1} parent=55 // pred_fallthru
          _
      $region56: #{tpu_custom_call.1} parent=5 // pred_fallthru
        _
      %p410 = scmp.le.s32.totalorder 1, %s24
      %p411 = scmp.lt.s32.totalorder %s24, 3
      %p412 = pnand %p410, %p411
      %p413 = pneg %p412
      // Predicated region
      $region65: #{tpu_custom_call.1} parent=5 // pred_check
        _
      $region66: #{tpu_custom_call.1} parent=5 // pred_check_branch
        %415 = sbr.rel (%p412) target = $region68
      $region67: #{tpu_custom_call.1} parent=5 // pred_region
        %s416 = ssub.s32 %s24, 1
        // Predicated region
        $region69: #{tpu_custom_call.1} parent=67 // pred_check
          %p417 = pneg %p197
        $region70: #{tpu_custom_call.1} parent=67 // pred_check_branch
          %419 = sbr.rel (%p417) target = $region72
        $region71: #{tpu_custom_call.1} parent=67 // pred_region
          %420 = dma.done [#allocation4], 3072
        $region72: #{tpu_custom_call.1} parent=67 // pred_fallthru
          _
        %p421 = scmp.lt.s32.totalorder %s33, 1
        %s422 = scalar_select %p421, %s33, 1
        %p423 = scmp.lt.s32.totalorder %s34, 0
        %s424 = scalar_select %p423, %s34, 0
        %s425 = smul.addr %s424, 17
        %s426 = smul.addr %s422, 17
        %s427 = sadd.s32 %s425, %s426
        %s428 = smul.addr %s427, 4
        %s429 = scalar_lea.vmem %s0, %s428
        %p430 = pneg %p64
        %p431 = pneg %p61
        %p432 = scmp.lt.s32.totalorder %s33, 1
        %s433 = scalar_select %p432, %s33, 1
        %p434 = scmp.lt.s32.totalorder %s34, 0
        %s435 = scalar_select %p434, %s34, 0
        %s436 = sadd.s32 %s435, %s433
        %s437 = scalar_lea.vmem %s1, %s436
        %p438 = pneg %p92
        %p439 = pneg %p89
        %p440 = pneg %p113
        %p441 = pneg %p110
        %p442 = pneg %p134
        %p443 = pneg %p131
        %p444 = pneg %p155
        %p445 = pneg %p152
        %p446 = pneg %p176
        %p447 = pneg %p173
        %p448 = pneg %p197
        %p449 = pneg %p194
        %p450 = pneg %p218
        %p451 = pneg %p215
        %p452 = pneg %p239
        %p453 = pneg %p236
        %p454 = pneg %p260
        %p455 = pneg %p257
        %p456 = pneg %p281
        %p457 = pneg %p278
        %p458 = pneg %p302
        %p459 = pneg %p299
        %p460 = pneg %p330
        %p461 = pneg %p327
        %s462 = sand.u32 %s317, 1
        %s463 = scalar_lea.sflag [#allocation5], %s462
        %s464 = sand.u32 %s317, 1
        %s465 = scalar_lea.vmem [#allocation6], %s464
        %p466 = scmp.lt.s32.totalorder %s33, 1
        %s467 = scalar_select %p466, %s33, 1
        %p468 = scmp.lt.s32.totalorder %s34, 0
        %s469 = scalar_select %p468, %s34, 0
        %s470 = smul.addr %s469, 17
        %s471 = smul.addr %s467, 17
        %s472 = sadd.s32 %s470, %s471
        %s473 = smul.addr %s472, 4
        %s474 = scalar_lea.vmem %s0, %s473
        %p475 = scmp.lt.s32.totalorder %s33, 1
        %s476 = scalar_select %p475, %s33, 1
        %p477 = scmp.lt.s32.totalorder %s34, 0
        %s478 = scalar_select %p477, %s34, 0
        %s479 = sadd.s32 %s478, %s476
        %s480 = scalar_lea.vmem %s1, %s479
        %v482 = vld [vmem:[%s474] sm:$0xf]
        %v483 = vld [vmem:[%s474 + $0x4] sm:$0xf]
        %v484 = vld [vmem:[%s474 + $0x8] sm:$0xf]
        %v485 = vld [vmem:[%s474 + $0xc] sm:$0xf]
        %v486 = vld [vmem:[%s474 + $0x10] sm:$0xf]
        %v487 = vld [vmem:[%s474 + $0x14] sm:$0xf]
        %v488 = vld [vmem:[%s474 + $0x18] sm:$0xf]
        %v489 = vld [vmem:[%s474 + $0x1c] sm:$0xf]
        %v490 = vld [vmem:[%s474 + $0x20] sm:$0xf]
        %v491 = vld [vmem:[%s474 + $0x24] sm:$0xf]
        %v492 = vld [vmem:[%s474 + $0x28] sm:$0xf]
        %v493 = vld [vmem:[%s474 + $0x2c] sm:$0xf]
        %v494 = vld [vmem:[%s474 + $0x30] sm:$0xf]
        %v495 = vld [vmem:[%s474 + $0x34] sm:$0xf]
        %v496 = vld [vmem:[%s474 + $0x38] sm:$0xf]
        %v497 = vld [vmem:[%s474 + $0x3c] sm:$0xf]
        %v498 = vld [vmem:[%s474 + $0x40] sm:$0x3]
        %v499 = vld [vmem:[%s2] sm:$0xf]
        %v500 = vld [vmem:[%s2 + $0x4] sm:$0xf]
        %v501 = vld [vmem:[%s2 + $0x8] sm:$0xf]
        %v502 = vld [vmem:[%s2 + $0xc] sm:$0xf]
        %v503 = vld [vmem:[%s2 + $0x10] sm:$0xf]
        %v504 = vld [vmem:[%s2 + $0x14] sm:$0xf]
        %v505 = vld [vmem:[%s2 + $0x18] sm:$0xf]
        %v506 = vld [vmem:[%s2 + $0x1c] sm:$0xf]
        %v507 = vld [vmem:[%s2 + $0x20] sm:$0xf]
        %v508 = vld [vmem:[%s2 + $0x24] sm:$0xf]
        %v509 = vld [vmem:[%s2 + $0x28] sm:$0xf]
        %v510 = vld [vmem:[%s2 + $0x2c] sm:$0xf]
        %v511 = vld [vmem:[%s2 + $0x30] sm:$0xf]
        %v512 = vld [vmem:[%s2 + $0x34] sm:$0xf]
        %v513 = vld [vmem:[%s2 + $0x38] sm:$0xf]
        %v514 = vld [vmem:[%s2 + $0x3c] sm:$0xf]
        %s515 = scalar_lea.vmem %s2, 64
        %v516 = vld [vmem:[%s515] sm:$0xf]
        %v517 = vld [vmem:[%s515 + $0x4] sm:$0xf]
        %v518 = vld [vmem:[%s515 + $0x8] sm:$0xf]
        %v519 = vld [vmem:[%s515 + $0xc] sm:$0xf]
        %v520 = vld [vmem:[%s515 + $0x10] sm:$0xf]
        %v521 = vld [vmem:[%s515 + $0x14] sm:$0xf]
        %v522 = vld [vmem:[%s515 + $0x18] sm:$0xf]
        %v523 = vld [vmem:[%s515 + $0x1c] sm:$0xf]
        %v524 = vld [vmem:[%s515 + $0x20] sm:$0xf]
        %v525 = vld [vmem:[%s515 + $0x24] sm:$0xf]
        %v526 = vld [vmem:[%s515 + $0x28] sm:$0xf]
        %v527 = vld [vmem:[%s515 + $0x2c] sm:$0xf]
        %v528 = vld [vmem:[%s515 + $0x30] sm:$0xf]
        %v529 = vld [vmem:[%s515 + $0x34] sm:$0xf]
        %v530 = vld [vmem:[%s515 + $0x38] sm:$0xf]
        %v531 = vld [vmem:[%s515 + $0x3c] sm:$0xf]
        %v549 = vunpack.c.l.b16 %v482
        %v550 = vunpack.c.l.b16 %v483
        %v551 = vunpack.c.l.b16 %v484
        %v552 = vunpack.c.l.b16 %v485
        %v553 = vunpack.c.l.b16 %v486
        %v554 = vunpack.c.l.b16 %v487
        %v555 = vunpack.c.l.b16 %v488
        %v556 = vunpack.c.l.b16 %v489
        %v557 = vunpack.c.l.b16 %v490
        %v558 = vunpack.c.l.b16 %v491
        %v559 = vunpack.c.l.b16 %v492
        %v560 = vunpack.c.l.b16 %v493
        %v561 = vunpack.c.l.b16 %v494
        %v562 = vunpack.c.l.b16 %v495
        %v563 = vunpack.c.l.b16 %v496
        %v564 = vunpack.c.l.b16 %v497
        %v565 = vunpack.c.l.b16 %v498
        %v566 = vpack.c.b16 %v550, %v549
        %v567 = vpack.c.b16 %v552, %v551
        %v568 = vpack.c.b16 %v554, %v553
        %v569 = vpack.c.b16 %v556, %v555
        %v570 = vpack.c.b16 %v558, %v557
        %v571 = vpack.c.b16 %v560, %v559
        %v572 = vpack.c.b16 %v562, %v561
        %v573 = vpack.c.b16 %v564, %v563
        %v574 = vpack.c.b16 %v565, %v565
        %vm575 = vsmask.f32 7424
        %v577 = vshrl.u32 %v566, 16
        %v579 = vshll.u32 %v566, 16
        %v581 = vrot.slane %v579, 1
        %v582 = vor.u32 %v577, %v581
        %v584 = vshll.u32 %v567, 16
        %v586 = vrot.slane %v584, 1
        %v587 = vsel %vm575, %v582, %v586
        %v588 = vshrl.u32 %v567, 16
        %v590 = vor.u32 %v588, %v586
        %v592 = vshll.u32 %v568, 16
        %v594 = vrot.slane %v592, 1
        %v595 = vsel %vm575, %v590, %v594
        %v596 = vshrl.u32 %v568, 16
        %v598 = vor.u32 %v596, %v594
        %v600 = vshll.u32 %v569, 16
        %v602 = vrot.slane %v600, 1
        %v603 = vsel %vm575, %v598, %v602
        %v604 = vshrl.u32 %v569, 16
        %v606 = vor.u32 %v604, %v602
        %v608 = vshll.u32 %v570, 16
        %v610 = vrot.slane %v608, 1
        %v611 = vsel %vm575, %v606, %v610
        %v612 = vshrl.u32 %v570, 16
        %v614 = vor.u32 %v612, %v610
        %v616 = vshll.u32 %v571, 16
        %v618 = vrot.slane %v616, 1
        %v619 = vsel %vm575, %v614, %v618
        %v620 = vshrl.u32 %v571, 16
        %v622 = vor.u32 %v620, %v618
        %v624 = vshll.u32 %v572, 16
        %v626 = vrot.slane %v624, 1
        %v627 = vsel %vm575, %v622, %v626
        %v628 = vshrl.u32 %v572, 16
        %v630 = vor.u32 %v628, %v626
        %v632 = vshll.u32 %v573, 16
        %v634 = vrot.slane %v632, 1
        %v635 = vsel %vm575, %v630, %v634
        %v636 = vshrl.u32 %v573, 16
        %v638 = vor.u32 %v636, %v634
        %v640 = vshll.u32 %v574, 16
        %v642 = vrot.slane %v640, 1
        %v643 = vsel %vm575, %v638, %v642
        %v644 = vshrl.u32 %v574, 16
        %v646 = vor.u32 %v644, %v642
        %v672 = vunpack.c.l.b16 %v516
        %v673 = vunpack.c.l.b16 %v517
        %v674 = vunpack.c.l.b16 %v518
        %v675 = vunpack.c.l.b16 %v519
        %v676 = vunpack.c.l.b16 %v520
        %v677 = vunpack.c.l.b16 %v521
        %v678 = vunpack.c.l.b16 %v522
        %v679 = vunpack.c.l.b16 %v523
        %v680 = vunpack.c.l.b16 %v524
        %v681 = vunpack.c.l.b16 %v525
        %v682 = vunpack.c.l.b16 %v526
        %v683 = vunpack.c.l.b16 %v527
        %v684 = vunpack.c.l.b16 %v528
        %v685 = vunpack.c.l.b16 %v529
        %v686 = vunpack.c.l.b16 %v530
        %v687 = vunpack.c.l.b16 %v531
        %v688 = vpack.c.b16 %v673, %v672
        %v689 = vpack.c.b16 %v675, %v674
        %v690 = vpack.c.b16 %v677, %v676
        %v691 = vpack.c.b16 %v679, %v678
        %v692 = vpack.c.b16 %v681, %v680
        %v693 = vpack.c.b16 %v683, %v682
        %v694 = vpack.c.b16 %v685, %v684
        %v695 = vpack.c.b16 %v687, %v686
        %704 = vmatprep.subr.bf16.mxu0 0
        %705 = vmatpush1.bf16.msra.mxu0 %v688
        %706 = vmatprep.subr.bf16.mxu0 0
        %707 = vmatpush1.bf16.msra.mxu0 %v689
        %708 = vmatprep.subr.bf16.mxu0 0
        %709 = vmatpush1.bf16.msra.mxu0 %v690
        %710 = vmatprep.subr.bf16.mxu0 0
        %711 = vmatpush1.bf16.msra.mxu0 %v691
        %712 = vmatprep.subr.bf16.mxu0 0
        %713 = vmatpush1.bf16.msra.mxu0 %v692
        %714 = vmatprep.subr.bf16.mxu0 0
        %715 = vmatpush1.bf16.msra.mxu0 %v693
        %716 = vmatprep.subr.bf16.mxu0 0
        %717 = vmatpush1.bf16.msra.mxu0 %v694
        %718 = vmatprep.subr.bf16.mxu0 0
        %719 = vmatpush1.bf16.msra.mxu0 %v695
        %720 = vmatprep.subr.bf16.mxu0 0
        %721 = vmatpush1.bf16.msra.mxu0 0
        %722 = vmatprep.subr.bf16.mxu0 0
        %723 = vmatpush1.bf16.msra.mxu0 0
        %724 = vmatprep.subr.bf16.mxu0 0
        %725 = vmatpush1.bf16.msra.mxu0 0
        %726 = vmatprep.subr.bf16.mxu0 0
        %727 = vmatpush1.bf16.msra.mxu0 0
        %728 = vmatprep.subr.bf16.mxu0 0
        %729 = vmatpush1.bf16.msra.mxu0 0
        %730 = vmatprep.subr.bf16.mxu0 0
        %731 = vmatpush1.bf16.msra.mxu0 0
        %732 = vmatprep.subr.bf16.mxu0 0
        %733 = vmatpush1.bf16.msra.mxu0 0
        %734 = vmatprep.subr.bf16.mxu0 0
        %735 = vmatpush1.bf16.msra.mxu0 0
        %736 = vmatprep.mubr.bf16.mxu0 0
        %737 = vmatmul.mubr.bf16.gmra.mrb[0].mxu0 %v587
        %v738 = vpop.f32.mrb[0].mxu0
        %v739 = vadd.f32 0.0, %v738
        %v740 = vpop.f32.mrb[0].mxu0
        %v741 = vpop.f32.mrb[0].mxu0
        %v742 = vadd.f32 0.0, %v741
        %v743 = vpop.f32.mrb[0].mxu0
        %744 = vmatprep.mubr.bf16.mxu0 0
        %745 = vmatmul.mubr.bf16.gmra.mrb[0].mxu0 %v595
        %v746 = vpop.f32.mrb[0].mxu0
        %v747 = vadd.f32 0.0, %v746
        %v748 = vpop.f32.mrb[0].mxu0
        %v749 = vpop.f32.mrb[0].mxu0
        %v750 = vadd.f32 0.0, %v749
        %v751 = vpop.f32.mrb[0].mxu0
        %752 = vmatprep.mubr.bf16.mxu0 0
        %753 = vmatmul.mubr.bf16.gmra.mrb[0].mxu0 %v603
        %v754 = vpop.f32.mrb[0].mxu0
        %v755 = vadd.f32 0.0, %v754
        %v756 = vpop.f32.mrb[0].mxu0
        %v757 = vpop.f32.mrb[0].mxu0
        %v758 = vadd.f32 0.0, %v757
        %v759 = vpop.f32.mrb[0].mxu0
        %760 = vmatprep.mubr.bf16.mxu0 0
        %761 = vmatmul.mubr.bf16.gmra.mrb[0].mxu0 %v611
        %v762 = vpop.f32.mrb[0].mxu0
        %v763 = vadd.f32 0.0, %v762
        %v764 = vpop.f32.mrb[0].mxu0
        %v765 = vpop.f32.mrb[0].mxu0
        %v766 = vadd.f32 0.0, %v765
        %v767 = vpop.f32.mrb[0].mxu0
        %768 = vmatprep.mubr.bf16.mxu0 0
        %769 = vmatmul.mubr.bf16.gmra.mrb[0].mxu0 %v619
        %v770 = vpop.f32.mrb[0].mxu0
        %v771 = vadd.f32 0.0, %v770
        %v772 = vpop.f32.mrb[0].mxu0
        %v773 = vpop.f32.mrb[0].mxu0
        %v774 = vadd.f32 0.0, %v773
        %v775 = vpop.f32.mrb[0].mxu0
        %776 = vmatprep.mubr.bf16.mxu0 0
        %777 = vmatmul.mubr.bf16.gmra.mrb[0].mxu0 %v627
        %v778 = vpop.f32.mrb[0].mxu0
        %v779 = vadd.f32 0.0, %v778
        %v780 = vpop.f32.mrb[0].mxu0
        %v781 = vpop.f32.mrb[0].mxu0
        %v782 = vadd.f32 0.0, %v781
        %v783 = vpop.f32.mrb[0].mxu0
        %784 = vmatprep.mubr.bf16.mxu0 0
        %785 = vmatmul.mubr.bf16.gmra.mrb[0].mxu0 %v635
        %v786 = vpop.f32.mrb[0].mxu0
        %v787 = vadd.f32 0.0, %v786
        %v788 = vpop.f32.mrb[0].mxu0
        %v789 = vpop.f32.mrb[0].mxu0
        %v790 = vadd.f32 0.0, %v789
        %v791 = vpop.f32.mrb[0].mxu0
        %792 = vmatprep.mubr.bf16.mxu0 0
        %793 = vmatmul.mubr.bf16.gmra.mrb[0].mxu0 %v643
        %v794 = vpop.f32.mrb[0].mxu0
        %v795 = vadd.f32 0.0, %v794
        %v796 = vpop.f32.mrb[0].mxu0
        %v797 = vpop.f32.mrb[0].mxu0
        %v798 = vadd.f32 0.0, %v797
        %v799 = vpop.f32.mrb[0].mxu0
        %800 = vmatprep.mubr.bf16.mxu0 0
        %801 = vmatmul.mubr.bf16.gmra.mrb[0].mxu0 %v646
        %v802 = vpop.f32.mrb[0].mxu0
        %v803 = vadd.f32 0.0, %v802
        %v804 = vpop.f32.mrb[0].mxu0
        %v805 = vpop.f32.mrb[0].mxu0
        %v806 = vpop.f32.mrb[0].mxu0
        %807 = vdwg.mxu0
        %v833 = vunpack.c.l.b16 %v499
        %v834 = vunpack.c.l.b16 %v500
        %v835 = vunpack.c.l.b16 %v501
        %v836 = vunpack.c.l.b16 %v502
        %v837 = vunpack.c.l.b16 %v503
        %v838 = vunpack.c.l.b16 %v504
        %v839 = vunpack.c.l.b16 %v505
        %v840 = vunpack.c.l.b16 %v506
        %v841 = vunpack.c.l.b16 %v507
        %v842 = vunpack.c.l.b16 %v508
        %v843 = vunpack.c.l.b16 %v509
        %v844 = vunpack.c.l.b16 %v510
        %v845 = vunpack.c.l.b16 %v511
        %v846 = vunpack.c.l.b16 %v512
        %v847 = vunpack.c.l.b16 %v513
        %v848 = vunpack.c.l.b16 %v514
        %v849 = vpack.c.b16 %v834, %v833
        %v850 = vpack.c.b16 %v836, %v835
        %v851 = vpack.c.b16 %v838, %v837
        %v852 = vpack.c.b16 %v840, %v839
        %v853 = vpack.c.b16 %v842, %v841
        %v854 = vpack.c.b16 %v844, %v843
        %v855 = vpack.c.b16 %v846, %v845
        %v856 = vpack.c.b16 %v848, %v847
        %865 = vmatprep.subr.bf16.mxu0 0
        %866 = vmatpush1.bf16.msra.mxu0 %v849
        %867 = vmatprep.subr.bf16.mxu0 0
        %868 = vmatpush1.bf16.msra.mxu0 %v850
        %869 = vmatprep.subr.bf16.mxu0 0
        %870 = vmatpush1.bf16.msra.mxu0 %v851
        %871 = vmatprep.subr.bf16.mxu0 0
        %872 = vmatpush1.bf16.msra.mxu0 %v852
        %873 = vmatprep.subr.bf16.mxu0 0
        %874 = vmatpush1.bf16.msra.mxu0 %v853
        %875 = vmatprep.subr.bf16.mxu0 0
        %876 = vmatpush1.bf16.msra.mxu0 %v854
        %877 = vmatprep.subr.bf16.mxu0 0
        %878 = vmatpush1.bf16.msra.mxu0 %v855
        %879 = vmatprep.subr.bf16.mxu0 0
        %880 = vmatpush1.bf16.msra.mxu0 %v856
        %881 = vmatprep.subr.bf16.mxu0 0
        %882 = vmatpush1.bf16.msra.mxu0 0
        %883 = vmatprep.subr.bf16.mxu0 0
        %884 = vmatpush1.bf16.msra.mxu0 0
        %885 = vmatprep.subr.bf16.mxu0 0
        %886 = vmatpush1.bf16.msra.mxu0 0
        %887 = vmatprep.subr.bf16.mxu0 0
        %888 = vmatpush1.bf16.msra.mxu0 0
        %889 = vmatprep.subr.bf16.mxu0 0
        %890 = vmatpush1.bf16.msra.mxu0 0
        %891 = vmatprep.subr.bf16.mxu0 0
        %892 = vmatpush1.bf16.msra.mxu0 0
        %893 = vmatprep.subr.bf16.mxu0 0
        %894 = vmatpush1.bf16.msra.mxu0 0
        %895 = vmatprep.subr.bf16.mxu0 0
        %896 = vmatpush1.bf16.msra.mxu0 0
        %897 = vmatprep.mubr.bf16.mxu0 0
        %898 = vmatmul.mubr.bf16.gmra.mrb[0].mxu0 %v566
        %v899 = vpop.f32.mrb[0].mxu0
        %v900 = vadd.f32 %v739, %v899
        %v901 = vpop.f32.mrb[0].mxu0
        %v902 = vpop.f32.mrb[0].mxu0
        %v903 = vadd.f32 %v742, %v902
        %v904 = vpop.f32.mrb[0].mxu0
        %905 = vmatprep.mubr.bf16.mxu0 0
        %906 = vmatmul.mubr.bf16.gmra.mrb[0].mxu0 %v567
        %v907 = vpop.f32.mrb[0].mxu0
        %v908 = vadd.f32 %v747, %v907
        %v909 = vpop.f32.mrb[0].mxu0
        %v910 = vpop.f32.mrb[0].mxu0
        %v911 = vadd.f32 %v750, %v910
        %v912 = vpop.f32.mrb[0].mxu0
        %913 = vmatprep.mubr.bf16.mxu0 0
        %914 = vmatmul.mubr.bf16.gmra.mrb[0].mxu0 %v568
        %v915 = vpop.f32.mrb[0].mxu0
        %v916 = vadd.f32 %v755, %v915
        %v917 = vpop.f32.mrb[0].mxu0
        %v918 = vpop.f32.mrb[0].mxu0
        %v919 = vadd.f32 %v758, %v918
        %v920 = vpop.f32.mrb[0].mxu0
        %921 = vmatprep.mubr.bf16.mxu0 0
        %922 = vmatmul.mubr.bf16.gmra.mrb[0].mxu0 %v569
        %v923 = vpop.f32.mrb[0].mxu0
        %v924 = vadd.f32 %v763, %v923
        %v925 = vpop.f32.mrb[0].mxu0
        %v926 = vpop.f32.mrb[0].mxu0
        %v927 = vadd.f32 %v766, %v926
        %v928 = vpop.f32.mrb[0].mxu0
        %929 = vmatprep.mubr.bf16.mxu0 0
        %930 = vmatmul.mubr.bf16.gmra.mrb[0].mxu0 %v570
        %v931 = vpop.f32.mrb[0].mxu0
        %v932 = vadd.f32 %v771, %v931
        %v933 = vpop.f32.mrb[0].mxu0
        %v934 = vpop.f32.mrb[0].mxu0
        %v935 = vadd.f32 %v774, %v934
        %v936 = vpop.f32.mrb[0].mxu0
        %937 = vmatprep.mubr.bf16.mxu0 0
        %938 = vmatmul.mubr.bf16.gmra.mrb[0].mxu0 %v571
        %v939 = vpop.f32.mrb[0].mxu0
        %v940 = vadd.f32 %v779, %v939
        %v941 = vpop.f32.mrb[0].mxu0
        %v942 = vpop.f32.mrb[0].mxu0
        %v943 = vadd.f32 %v782, %v942
        %v944 = vpop.f32.mrb[0].mxu0
        %945 = vmatprep.mubr.bf16.mxu0 0
        %946 = vmatmul.mubr.bf16.gmra.mrb[0].mxu0 %v572
        %v947 = vpop.f32.mrb[0].mxu0
        %v948 = vadd.f32 %v787, %v947
        %v949 = vpop.f32.mrb[0].mxu0
        %v950 = vpop.f32.mrb[0].mxu0
        %v951 = vadd.f32 %v790, %v950
        %v952 = vpop.f32.mrb[0].mxu0
        %953 = vmatprep.mubr.bf16.mxu0 0
        %954 = vmatmul.mubr.bf16.gmra.mrb[0].mxu0 %v573
        %v955 = vpop.f32.mrb[0].mxu0
        %v956 = vadd.f32 %v795, %v955
        %v957 = vpop.f32.mrb[0].mxu0
        %v958 = vpop.f32.mrb[0].mxu0
        %v959 = vadd.f32 %v798, %v958
        %v960 = vpop.f32.mrb[0].mxu0
        %961 = vmatprep.mubr.bf16.mxu0 0
        %962 = vmatmul.mubr.bf16.gmra.mrb[0].mxu0 %v574
        %v963 = vpop.f32.mrb[0].mxu0
        %v964 = vadd.f32 %v803, %v963
        %v965 = vpop.f32.mrb[0].mxu0
        %v966 = vpop.f32.mrb[0].mxu0
        %v967 = vpop.f32.mrb[0].mxu0
        %968 = vdwg.mxu0
        %s969 = scalar_lea.vmem %s2, 128
        %v970 = vld [vmem:[%s969] sm:$0xf]
        %v971 = vld [vmem:[%s969 + $0x4] sm:$0xf]
        %v972 = vld [vmem:[%s969 + $0x8] sm:$0xf]
        %v973 = vld [vmem:[%s969 + $0xc] sm:$0xf]
        %v974 = vld [vmem:[%s969 + $0x10] sm:$0xf]
        %v975 = vld [vmem:[%s969 + $0x14] sm:$0xf]
        %v976 = vld [vmem:[%s969 + $0x18] sm:$0xf]
        %v977 = vld [vmem:[%s969 + $0x1c] sm:$0xf]
        %v978 = vld [vmem:[%s969 + $0x20] sm:$0xf]
        %v979 = vld [vmem:[%s969 + $0x24] sm:$0xf]
        %v980 = vld [vmem:[%s969 + $0x28] sm:$0xf]
        %v981 = vld [vmem:[%s969 + $0x2c] sm:$0xf]
        %v982 = vld [vmem:[%s969 + $0x30] sm:$0xf]
        %v983 = vld [vmem:[%s969 + $0x34] sm:$0xf]
        %v984 = vld [vmem:[%s969 + $0x38] sm:$0xf]
        %v985 = vld [vmem:[%s969 + $0x3c] sm:$0xf]
        %vm986 = vcmask 1046528
        %v987 = vrot.slane %v566, 1
        %v988 = vrot.slane %v567, 1
        %v989 = vsel %vm986, %v987, %v988
        %v990 = vrot.slane %v568, 1
        %v991 = vsel %vm986, %v988, %v990
        %v992 = vrot.slane %v569, 1
        %v993 = vsel %vm986, %v990, %v992
        %v994 = vrot.slane %v570, 1
        %v995 = vsel %vm986, %v992, %v994
        %v996 = vrot.slane %v571, 1
        %v997 = vsel %vm986, %v994, %v996
        %v998 = vrot.slane %v572, 1
        %v999 = vsel %vm986, %v996, %v998
        %v1000 = vrot.slane %v573, 1
        %v1001 = vsel %vm986, %v998, %v1000
        %v1002 = vrot.slane %v574, 1
        %v1003 = vsel %vm986, %v1000, %v1002
        %v1029 = vunpack.c.l.b16 %v970
        %v1030 = vunpack.c.l.b16 %v971
        %v1031 = vunpack.c.l.b16 %v972
        %v1032 = vunpack.c.l.b16 %v973
        %v1033 = vunpack.c.l.b16 %v974
        %v1034 = vunpack.c.l.b16 %v975
        %v1035 = vunpack.c.l.b16 %v976
        %v1036 = vunpack.c.l.b16 %v977
        %v1037 = vunpack.c.l.b16 %v978
        %v1038 = vunpack.c.l.b16 %v979
        %v1039 = vunpack.c.l.b16 %v980
        %v1040 = vunpack.c.l.b16 %v981
        %v1041 = vunpack.c.l.b16 %v982
        %v1042 = vunpack.c.l.b16 %v983
        %v1043 = vunpack.c.l.b16 %v984
        %v1044 = vunpack.c.l.b16 %v985
        %v1045 = vpack.c.b16 %v1030, %v1029
        %v1046 = vpack.c.b16 %v1032, %v1031
        %v1047 = vpack.c.b16 %v1034, %v1033
        %v1048 = vpack.c.b16 %v1036, %v1035
        %v1049 = vpack.c.b16 %v1038, %v1037
        %v1050 = vpack.c.b16 %v1040, %v1039
        %v1051 = vpack.c.b16 %v1042, %v1041
        %v1052 = vpack.c.b16 %v1044, %v1043
        %1061 = vmatprep.subr.bf16.mxu0 0
        %1062 = vmatpush1.bf16.msra.mxu0 %v1045
        %1063 = vmatprep.subr.bf16.mxu0 0
        %1064 = vmatpush1.bf16.msra.mxu0 %v1046
        %1065 = vmatprep.subr.bf16.mxu0 0
        %1066 = vmatpush1.bf16.msra.mxu0 %v1047
        %1067 = vmatprep.subr.bf16.mxu0 0
        %1068 = vmatpush1.bf16.msra.mxu0 %v1048
        %1069 = vmatprep.subr.bf16.mxu0 0
        %1070 = vmatpush1.bf16.msra.mxu0 %v1049
        %1071 = vmatprep.subr.bf16.mxu0 0
        %1072 = vmatpush1.bf16.msra.mxu0 %v1050
        %1073 = vmatprep.subr.bf16.mxu0 0
        %1074 = vmatpush1.bf16.msra.mxu0 %v1051
        %1075 = vmatprep.subr.bf16.mxu0 0
        %1076 = vmatpush1.bf16.msra.mxu0 %v1052
        %1077 = vmatprep.subr.bf16.mxu0 0
        %1078 = vmatpush1.bf16.msra.mxu0 0
        %1079 = vmatprep.subr.bf16.mxu0 0
        %1080 = vmatpush1.bf16.msra.mxu0 0
        %1081 = vmatprep.subr.bf16.mxu0 0
        %1082 = vmatpush1.bf16.msra.mxu0 0
        %1083 = vmatprep.subr.bf16.mxu0 0
        %1084 = vmatpush1.bf16.msra.mxu0 0
        %1085 = vmatprep.subr.bf16.mxu0 0
        %1086 = vmatpush1.bf16.msra.mxu0 0
        %1087 = vmatprep.subr.bf16.mxu0 0
        %1088 = vmatpush1.bf16.msra.mxu0 0
        %1089 = vmatprep.subr.bf16.mxu0 0
        %1090 = vmatpush1.bf16.msra.mxu0 0
        %1091 = vmatprep.subr.bf16.mxu0 0
        %1092 = vmatpush1.bf16.msra.mxu0 0
        %1093 = vmatprep.mubr.bf16.mxu0 0
        %1094 = vmatmul.mubr.bf16.gmra.mrb[0].mxu0 %v989
        %v1095 = vpop.f32.mrb[0].mxu0
        %v1096 = vadd.f32 0.0, %v1095
        %v1097 = vpop.f32.mrb[0].mxu0
        %v1098 = vpop.f32.mrb[0].mxu0
        %v1099 = vadd.f32 0.0, %v1098
        %v1100 = vpop.f32.mrb[0].mxu0
        %1101 = vmatprep.mubr.bf16.mxu0 0
        %1102 = vmatmul.mubr.bf16.gmra.mrb[0].mxu0 %v991
        %v1103 = vpop.f32.mrb[0].mxu0
        %v1104 = vadd.f32 0.0, %v1103
        %v1105 = vpop.f32.mrb[0].mxu0
        %v1106 = vpop.f32.mrb[0].mxu0
        %v1107 = vadd.f32 0.0, %v1106
        %v1108 = vpop.f32.mrb[0].mxu0
        %1109 = vmatprep.mubr.bf16.mxu0 0
        %1110 = vmatmul.mubr.bf16.gmra.mrb[0].mxu0 %v993
        %v1111 = vpop.f32.mrb[0].mxu0
        %v1112 = vadd.f32 0.0, %v1111
        %v1113 = vpop.f32.mrb[0].mxu0
        %v1114 = vpop.f32.mrb[0].mxu0
        %v1115 = vadd.f32 0.0, %v1114
        %v1116 = vpop.f32.mrb[0].mxu0
        %1117 = vmatprep.mubr.bf16.mxu0 0
        %1118 = vmatmul.mubr.bf16.gmra.mrb[0].mxu0 %v995
        %v1119 = vpop.f32.mrb[0].mxu0
        %v1120 = vadd.f32 0.0, %v1119
        %v1121 = vpop.f32.mrb[0].mxu0
        %v1122 = vpop.f32.mrb[0].mxu0
        %v1123 = vadd.f32 0.0, %v1122
        %v1124 = vpop.f32.mrb[0].mxu0
        %1125 = vmatprep.mubr.bf16.mxu0 0
        %1126 = vmatmul.mubr.bf16.gmra.mrb[0].mxu0 %v997
        %v1127 = vpop.f32.mrb[0].mxu0
        %v1128 = vadd.f32 0.0, %v1127
        %v1129 = vpop.f32.mrb[0].mxu0
        %v1130 = vpop.f32.mrb[0].mxu0
        %v1131 = vadd.f32 0.0, %v1130
        %v1132 = vpop.f32.mrb[0].mxu0
        %1133 = vmatprep.mubr.bf16.mxu0 0
        %1134 = vmatmul.mubr.bf16.gmra.mrb[0].mxu0 %v999
        %v1135 = vpop.f32.mrb[0].mxu0
        %v1136 = vadd.f32 0.0, %v1135
        %v1137 = vpop.f32.mrb[0].mxu0
        %v1138 = vpop.f32.mrb[0].mxu0
        %v1139 = vadd.f32 0.0, %v1138
        %v1140 = vpop.f32.mrb[0].mxu0
        %1141 = vmatprep.mubr.bf16.mxu0 0
        %1142 = vmatmul.mubr.bf16.gmra.mrb[0].mxu0 %v1001
        %v1143 = vpop.f32.mrb[0].mxu0
        %v1144 = vadd.f32 0.0, %v1143
        %v1145 = vpop.f32.mrb[0].mxu0
        %v1146 = vpop.f32.mrb[0].mxu0
        %v1147 = vadd.f32 0.0, %v1146
        %v1148 = vpop.f32.mrb[0].mxu0
        %1149 = vmatprep.mubr.bf16.mxu0 0
        %1150 = vmatmul.mubr.bf16.gmra.mrb[0].mxu0 %v1003
        %v1151 = vpop.f32.mrb[0].mxu0
        %v1152 = vadd.f32 0.0, %v1151
        %v1153 = vpop.f32.mrb[0].mxu0
        %v1154 = vpop.f32.mrb[0].mxu0
        %v1155 = vadd.f32 0.0, %v1154
        %v1156 = vpop.f32.mrb[0].mxu0
        %1157 = vmatprep.mubr.bf16.mxu0 0
        %1158 = vmatmul.mubr.bf16.gmra.mrb[0].mxu0 %v1002
        %v1159 = vpop.f32.mrb[0].mxu0
        %v1160 = vadd.f32 0.0, %v1159
        %v1161 = vpop.f32.mrb[0].mxu0
        %v1162 = vpop.f32.mrb[0].mxu0
        %v1163 = vpop.f32.mrb[0].mxu0
        %1164 = vdwg.mxu0
        %v1165 = vadd.f32 %v900, %v1096
        %v1166 = vadd.f32 %v903, %v1099
        %v1167 = vadd.f32 %v908, %v1104
        %v1168 = vadd.f32 %v911, %v1107
        %v1169 = vadd.f32 %v916, %v1112
        %v1170 = vadd.f32 %v919, %v1115
        %v1171 = vadd.f32 %v924, %v1120
        %v1172 = vadd.f32 %v927, %v1123
        %v1173 = vadd.f32 %v932, %v1128
        %v1174 = vadd.f32 %v935, %v1131
        %v1175 = vadd.f32 %v940, %v1136
        %v1176 = vadd.f32 %v943, %v1139
        %v1177 = vadd.f32 %v948, %v1144
        %v1178 = vadd.f32 %v951, %v1147
        %v1179 = vadd.f32 %v956, %v1152
        %v1180 = vadd.f32 %v959, %v1155
        %v1181 = vadd.f32 %v964, %v1160
        %v1182 = vld [vmem:[%s3] sm:$0x1]
        %v1184 = vlaneseq
        %v1185 = vshrl.u32 %v1184, 7
        %v1186 = vsub.s32 0, %v1185
        %v1187 = vrot.slane %v1182, %v1186
        %v1189 = vadd.f32 %v1165, %v1187
        %v1190 = vadd.f32 %v1166, %v1187
        %v1191 = vadd.f32 %v1167, %v1187
        %v1192 = vadd.f32 %v1168, %v1187
        %v1193 = vadd.f32 %v1169, %v1187
        %v1194 = vadd.f32 %v1170, %v1187
        %v1195 = vadd.f32 %v1171, %v1187
        %v1196 = vadd.f32 %v1172, %v1187
        %v1197 = vadd.f32 %v1173, %v1187
        %v1198 = vadd.f32 %v1174, %v1187
        %v1199 = vadd.f32 %v1175, %v1187
        %v1200 = vadd.f32 %v1176, %v1187
        %v1201 = vadd.f32 %v1177, %v1187
        %v1202 = vadd.f32 %v1178, %v1187
        %v1203 = vadd.f32 %v1179, %v1187
        %v1204 = vadd.f32 %v1180, %v1187
        %v1205 = vadd.f32 %v1181, %v1187
        %v1206 = vmax.f32 %v1189, 0.0
        %v1207 = vmax.f32 %v1190, 0.0
        %v1208 = vmax.f32 %v1191, 0.0
        %v1209 = vmax.f32 %v1192, 0.0
        %v1210 = vmax.f32 %v1193, 0.0
        %v1211 = vmax.f32 %v1194, 0.0
        %v1212 = vmax.f32 %v1195, 0.0
        %v1213 = vmax.f32 %v1196, 0.0
        %v1214 = vmax.f32 %v1197, 0.0
        %v1215 = vmax.f32 %v1198, 0.0
        %v1216 = vmax.f32 %v1199, 0.0
        %v1217 = vmax.f32 %v1200, 0.0
        %v1218 = vmax.f32 %v1201, 0.0
        %v1219 = vmax.f32 %v1202, 0.0
        %v1220 = vmax.f32 %v1203, 0.0
        %v1221 = vmax.f32 %v1204, 0.0
        %v1222 = vmax.f32 %v1205, 0.0
        %1223 = vadd.xlane.f32.xlu0 %v1206
        %v1224 = vpop.xlane.xlu0 %1223
        %1225 = vadd.xlane.f32.xlu0 %v1207
        %v1226 = vpop.xlane.xlu0 %1225
        %1227 = vadd.xlane.f32.xlu0 %v1208
        %v1228 = vpop.xlane.xlu0 %1227
        %1229 = vadd.xlane.f32.xlu0 %v1209
        %v1230 = vpop.xlane.xlu0 %1229
        %1231 = vadd.xlane.f32.xlu0 %v1210
        %v1232 = vpop.xlane.xlu0 %1231
        %1233 = vadd.xlane.f32.xlu0 %v1211
        %v1234 = vpop.xlane.xlu0 %1233
        %1235 = vadd.xlane.f32.xlu0 %v1212
        %v1236 = vpop.xlane.xlu0 %1235
        %1237 = vadd.xlane.f32.xlu0 %v1213
        %v1238 = vpop.xlane.xlu0 %1237
        %1239 = vadd.xlane.f32.xlu0 %v1214
        %v1240 = vpop.xlane.xlu0 %1239
        %1241 = vadd.xlane.f32.xlu0 %v1215
        %v1242 = vpop.xlane.xlu0 %1241
        %1243 = vadd.xlane.f32.xlu0 %v1216
        %v1244 = vpop.xlane.xlu0 %1243
        %1245 = vadd.xlane.f32.xlu0 %v1217
        %v1246 = vpop.xlane.xlu0 %1245
        %1247 = vadd.xlane.f32.xlu0 %v1218
        %v1248 = vpop.xlane.xlu0 %1247
        %1249 = vadd.xlane.f32.xlu0 %v1219
        %v1250 = vpop.xlane.xlu0 %1249
        %1251 = vadd.xlane.f32.xlu0 %v1220
        %v1252 = vpop.xlane.xlu0 %1251
        %1253 = vadd.xlane.f32.xlu0 %v1221
        %v1254 = vpop.xlane.xlu0 %1253
        %vm1255 = vcmask 1041408
        %v1256 = vsel %vm1255, %v1222, 0.0
        %1257 = vadd.xlane.f32.xlu0 %v1256
        %v1258 = vpop.xlane.xlu0 %1257
        %v1259 = vmul.f32 %v1224, 0.03125
        %v1260 = vmul.f32 %v1226, 0.03125
        %v1261 = vmul.f32 %v1228, 0.03125
        %v1262 = vmul.f32 %v1230, 0.03125
        %v1263 = vmul.f32 %v1232, 0.03125
        %v1264 = vmul.f32 %v1234, 0.03125
        %v1265 = vmul.f32 %v1236, 0.03125
        %v1266 = vmul.f32 %v1238, 0.03125
        %v1267 = vmul.f32 %v1240, 0.03125
        %v1268 = vmul.f32 %v1242, 0.03125
        %v1269 = vmul.f32 %v1244, 0.03125
        %v1270 = vmul.f32 %v1246, 0.03125
        %v1271 = vmul.f32 %v1248, 0.03125
        %v1272 = vmul.f32 %v1250, 0.03125
        %v1273 = vmul.f32 %v1252, 0.03125
        %v1274 = vmul.f32 %v1254, 0.03125
        %v1275 = vmul.f32 %v1258, 0.03125
        %v1276 = vmul.f32 %v1206, %v1206
        %v1277 = vmul.f32 %v1207, %v1207
        %v1278 = vmul.f32 %v1208, %v1208
        %v1279 = vmul.f32 %v1209, %v1209
        %v1280 = vmul.f32 %v1210, %v1210
        %v1281 = vmul.f32 %v1211, %v1211
        %v1282 = vmul.f32 %v1212, %v1212
        %v1283 = vmul.f32 %v1213, %v1213
        %v1284 = vmul.f32 %v1214, %v1214
        %v1285 = vmul.f32 %v1215, %v1215
        %v1286 = vmul.f32 %v1216, %v1216
        %v1287 = vmul.f32 %v1217, %v1217
        %v1288 = vmul.f32 %v1218, %v1218
        %v1289 = vmul.f32 %v1219, %v1219
        %v1290 = vmul.f32 %v1220, %v1220
        %v1291 = vmul.f32 %v1221, %v1221
        %v1292 = vmul.f32 %v1222, %v1222
        %1293 = vadd.xlane.f32.xlu0 %v1276
        %v1294 = vpop.xlane.xlu0 %1293
        %1295 = vadd.xlane.f32.xlu0 %v1277
        %v1296 = vpop.xlane.xlu0 %1295
        %1297 = vadd.xlane.f32.xlu0 %v1278
        %v1298 = vpop.xlane.xlu0 %1297
        %1299 = vadd.xlane.f32.xlu0 %v1279
        %v1300 = vpop.xlane.xlu0 %1299
        %1301 = vadd.xlane.f32.xlu0 %v1280
        %v1302 = vpop.xlane.xlu0 %1301
        %1303 = vadd.xlane.f32.xlu0 %v1281
        %v1304 = vpop.xlane.xlu0 %1303
        %1305 = vadd.xlane.f32.xlu0 %v1282
        %v1306 = vpop.xlane.xlu0 %1305
        %1307 = vadd.xlane.f32.xlu0 %v1283
        %v1308 = vpop.xlane.xlu0 %1307
        %1309 = vadd.xlane.f32.xlu0 %v1284
        %v1310 = vpop.xlane.xlu0 %1309
        %1311 = vadd.xlane.f32.xlu0 %v1285
        %v1312 = vpop.xlane.xlu0 %1311
        %1313 = vadd.xlane.f32.xlu0 %v1286
        %v1314 = vpop.xlane.xlu0 %1313
        %1315 = vadd.xlane.f32.xlu0 %v1287
        %v1316 = vpop.xlane.xlu0 %1315
        %1317 = vadd.xlane.f32.xlu0 %v1288
        %v1318 = vpop.xlane.xlu0 %1317
        %1319 = vadd.xlane.f32.xlu0 %v1289
        %v1320 = vpop.xlane.xlu0 %1319
        %1321 = vadd.xlane.f32.xlu0 %v1290
        %v1322 = vpop.xlane.xlu0 %1321
        %1323 = vadd.xlane.f32.xlu0 %v1291
        %v1324 = vpop.xlane.xlu0 %1323
        %v1325 = vsel %vm1255, %v1292, 0.0
        %1326 = vadd.xlane.f32.xlu0 %v1325
        %v1327 = vpop.xlane.xlu0 %1326
        %v1328 = vmul.f32 %v1294, 0.03125
        %v1329 = vmul.f32 %v1296, 0.03125
        %v1330 = vmul.f32 %v1298, 0.03125
        %v1331 = vmul.f32 %v1300, 0.03125
        %v1332 = vmul.f32 %v1302, 0.03125
        %v1333 = vmul.f32 %v1304, 0.03125
        %v1334 = vmul.f32 %v1306, 0.03125
        %v1335 = vmul.f32 %v1308, 0.03125
        %v1336 = vmul.f32 %v1310, 0.03125
        %v1337 = vmul.f32 %v1312, 0.03125
        %v1338 = vmul.f32 %v1314, 0.03125
        %v1339 = vmul.f32 %v1316, 0.03125
        %v1340 = vmul.f32 %v1318, 0.03125
        %v1341 = vmul.f32 %v1320, 0.03125
        %v1342 = vmul.f32 %v1322, 0.03125
        %v1343 = vmul.f32 %v1324, 0.03125
        %v1344 = vmul.f32 %v1327, 0.03125
        %v1345 = vmul.f32 %v1259, %v1259
        %v1346 = vmul.f32 %v1260, %v1260
        %v1347 = vmul.f32 %v1261, %v1261
        %v1348 = vmul.f32 %v1262, %v1262
        %v1349 = vmul.f32 %v1263, %v1263
        %v1350 = vmul.f32 %v1264, %v1264
        %v1351 = vmul.f32 %v1265, %v1265
        %v1352 = vmul.f32 %v1266, %v1266
        %v1353 = vmul.f32 %v1267, %v1267
        %v1354 = vmul.f32 %v1268, %v1268
        %v1355 = vmul.f32 %v1269, %v1269
        %v1356 = vmul.f32 %v1270, %v1270
        %v1357 = vmul.f32 %v1271, %v1271
        %v1358 = vmul.f32 %v1272, %v1272
        %v1359 = vmul.f32 %v1273, %v1273
        %v1360 = vmul.f32 %v1274, %v1274
        %v1361 = vmul.f32 %v1275, %v1275
        %v1362 = vsub.f32 %v1328, %v1345
        %v1363 = vsub.f32 %v1329, %v1346
        %v1364 = vsub.f32 %v1330, %v1347
        %v1365 = vsub.f32 %v1331, %v1348
        %v1366 = vsub.f32 %v1332, %v1349
        %v1367 = vsub.f32 %v1333, %v1350
        %v1368 = vsub.f32 %v1334, %v1351
        %v1369 = vsub.f32 %v1335, %v1352
        %v1370 = vsub.f32 %v1336, %v1353
        %v1371 = vsub.f32 %v1337, %v1354
        %v1372 = vsub.f32 %v1338, %v1355
        %v1373 = vsub.f32 %v1339, %v1356
        %v1374 = vsub.f32 %v1340, %v1357
        %v1375 = vsub.f32 %v1341, %v1358
        %v1376 = vsub.f32 %v1342, %v1359
        %v1377 = vsub.f32 %v1343, %v1360
        %v1378 = vsub.f32 %v1344, %v1361
        %v1379 = vmax.f32 %v1362, 0.0
        %v1380 = vmax.f32 %v1363, 0.0
        %v1381 = vmax.f32 %v1364, 0.0
        %v1382 = vmax.f32 %v1365, 0.0
        %v1383 = vmax.f32 %v1366, 0.0
        %v1384 = vmax.f32 %v1367, 0.0
        %v1385 = vmax.f32 %v1368, 0.0
        %v1386 = vmax.f32 %v1369, 0.0
        %v1387 = vmax.f32 %v1370, 0.0
        %v1388 = vmax.f32 %v1371, 0.0
        %v1389 = vmax.f32 %v1372, 0.0
        %v1390 = vmax.f32 %v1373, 0.0
        %v1391 = vmax.f32 %v1374, 0.0
        %v1392 = vmax.f32 %v1375, 0.0
        %v1393 = vmax.f32 %v1376, 0.0
        %v1394 = vmax.f32 %v1377, 0.0
        %v1395 = vmax.f32 %v1378, 0.0
        %v1396 = vsub.f32 %v1206, %v1259
        %v1397 = vsub.f32 %v1207, %v1260
        %v1398 = vsub.f32 %v1208, %v1261
        %v1399 = vsub.f32 %v1209, %v1262
        %v1400 = vsub.f32 %v1210, %v1263
        %v1401 = vsub.f32 %v1211, %v1264
        %v1402 = vsub.f32 %v1212, %v1265
        %v1403 = vsub.f32 %v1213, %v1266
        %v1404 = vsub.f32 %v1214, %v1267
        %v1405 = vsub.f32 %v1215, %v1268
        %v1406 = vsub.f32 %v1216, %v1269
        %v1407 = vsub.f32 %v1217, %v1270
        %v1408 = vsub.f32 %v1218, %v1271
        %v1409 = vsub.f32 %v1219, %v1272
        %v1410 = vsub.f32 %v1220, %v1273
        %v1411 = vsub.f32 %v1221, %v1274
        %v1412 = vsub.f32 %v1222, %v1275
        %v1413 = vadd.f32 %v1379, 1e-05
        %v1414 = vadd.f32 %v1380, 1e-05
        %v1415 = vadd.f32 %v1381, 1e-05
        %v1416 = vadd.f32 %v1382, 1e-05
        %v1417 = vadd.f32 %v1383, 1e-05
        %v1418 = vadd.f32 %v1384, 1e-05
        %v1419 = vadd.f32 %v1385, 1e-05
        %v1420 = vadd.f32 %v1386, 1e-05
        %v1421 = vadd.f32 %v1387, 1e-05
        %v1422 = vadd.f32 %v1388, 1e-05
        %v1423 = vadd.f32 %v1389, 1e-05
        %v1424 = vadd.f32 %v1390, 1e-05
        %v1425 = vadd.f32 %v1391, 1e-05
        %v1426 = vadd.f32 %v1392, 1e-05
        %v1427 = vadd.f32 %v1393, 1e-05
        %v1428 = vadd.f32 %v1394, 1e-05
        %v1429 = vadd.f32 %v1395, 1e-05
        %v1430 = vrsqrt.pop %v1413
        %v1431 = vrsqrt.pop %v1414
        %v1432 = vrsqrt.pop %v1415
        %v1433 = vrsqrt.pop %v1416
        %v1434 = vrsqrt.pop %v1417
        %v1435 = vrsqrt.pop %v1418
        %v1436 = vrsqrt.pop %v1419
        %v1437 = vrsqrt.pop %v1420
        %v1438 = vrsqrt.pop %v1421
        %v1439 = vrsqrt.pop %v1422
        %v1440 = vrsqrt.pop %v1423
        %v1441 = vrsqrt.pop %v1424
        %v1442 = vrsqrt.pop %v1425
        %v1443 = vrsqrt.pop %v1426
        %v1444 = vrsqrt.pop %v1427
        %v1445 = vrsqrt.pop %v1428
        %v1446 = vrsqrt.pop %v1429
        %v1447 = vmul.f32 %v1396, %v1430
        %v1448 = vmul.f32 %v1397, %v1431
        %v1449 = vmul.f32 %v1398, %v1432
        %v1450 = vmul.f32 %v1399, %v1433
        %v1451 = vmul.f32 %v1400, %v1434
        %v1452 = vmul.f32 %v1401, %v1435
        %v1453 = vmul.f32 %v1402, %v1436
        %v1454 = vmul.f32 %v1403, %v1437
        %v1455 = vmul.f32 %v1404, %v1438
        %v1456 = vmul.f32 %v1405, %v1439
        %v1457 = vmul.f32 %v1406, %v1440
        %v1458 = vmul.f32 %v1407, %v1441
        %v1459 = vmul.f32 %v1408, %v1442
        %v1460 = vmul.f32 %v1409, %v1443
        %v1461 = vmul.f32 %v1410, %v1444
        %v1462 = vmul.f32 %v1411, %v1445
        %v1463 = vmul.f32 %v1412, %v1446
        %v1464 = vld [vmem:[%s4] sm:$0x1]
        %v1466 = vlaneseq
        %v1467 = vshrl.u32 %v1466, 7
        %v1468 = vsub.s32 0, %v1467
        %v1469 = vrot.slane %v1464, %v1468
        %v1471 = vmul.f32 %v1447, %v1469
        %v1472 = vmul.f32 %v1448, %v1469
        %v1473 = vmul.f32 %v1449, %v1469
        %v1474 = vmul.f32 %v1450, %v1469
        %v1475 = vmul.f32 %v1451, %v1469
        %v1476 = vmul.f32 %v1452, %v1469
        %v1477 = vmul.f32 %v1453, %v1469
        %v1478 = vmul.f32 %v1454, %v1469
        %v1479 = vmul.f32 %v1455, %v1469
        %v1480 = vmul.f32 %v1456, %v1469
        %v1481 = vmul.f32 %v1457, %v1469
        %v1482 = vmul.f32 %v1458, %v1469
        %v1483 = vmul.f32 %v1459, %v1469
        %v1484 = vmul.f32 %v1460, %v1469
        %v1485 = vmul.f32 %v1461, %v1469
        %v1486 = vmul.f32 %v1462, %v1469
        %v1487 = vmul.f32 %v1463, %v1469
        %v1488 = vld [vmem:[%s5] sm:$0x1]
        %v1490 = vlaneseq
        %v1491 = vshrl.u32 %v1490, 7
        %v1492 = vsub.s32 0, %v1491
        %v1493 = vrot.slane %v1488, %v1492
        %v1495 = vadd.f32 %v1471, %v1493
        %v1496 = vadd.f32 %v1472, %v1493
        %v1497 = vadd.f32 %v1473, %v1493
        %v1498 = vadd.f32 %v1474, %v1493
        %v1499 = vadd.f32 %v1475, %v1493
        %v1500 = vadd.f32 %v1476, %v1493
        %v1501 = vadd.f32 %v1477, %v1493
        %v1502 = vadd.f32 %v1478, %v1493
        %v1503 = vadd.f32 %v1479, %v1493
        %v1504 = vadd.f32 %v1480, %v1493
        %v1505 = vadd.f32 %v1481, %v1493
        %v1506 = vadd.f32 %v1482, %v1493
        %v1507 = vadd.f32 %v1483, %v1493
        %v1508 = vadd.f32 %v1484, %v1493
        %v1509 = vadd.f32 %v1485, %v1493
        %v1510 = vadd.f32 %v1486, %v1493
        %v1511 = vadd.f32 %v1487, %v1493
        %s1512 = smul.u32 %s34, 128
        %s1513 = sadd.s32 %s1512, 4294967295
        %v1514 = vlaneseq
        %v1515 = vshrl.u32 %v1514, 7
        %v1516 = vadd.s32 %v1515, 8
        %v1517 = vadd.s32 %v1515, 16
        %v1518 = vadd.s32 %v1515, 24
        %v1519 = vadd.s32 %v1515, 32
        %v1520 = vadd.s32 %v1515, 40
        %v1521 = vadd.s32 %v1515, 48
        %v1522 = vadd.s32 %v1515, 56
        %v1523 = vadd.s32 %v1515, 64
        %v1524 = vadd.s32 %v1515, 72
        %v1525 = vadd.s32 %v1515, 80
        %v1526 = vadd.s32 %v1515, 88
        %v1527 = vadd.s32 %v1515, 96
        %v1528 = vadd.s32 %v1515, 104
        %v1529 = vadd.s32 %v1515, 112
        %v1530 = vadd.s32 %v1515, 120
        %v1531 = vadd.s32 %v1515, 128
        %v1532 = vstv %s1513
        %v1533 = vadd.s32 %v1515, %v1532
        %v1534 = vadd.s32 %v1516, %v1532
        %v1535 = vadd.s32 %v1517, %v1532
        %v1536 = vadd.s32 %v1518, %v1532
        %v1537 = vadd.s32 %v1519, %v1532
        %v1538 = vadd.s32 %v1520, %v1532
        %v1539 = vadd.s32 %v1521, %v1532
        %v1540 = vadd.s32 %v1522, %v1532
        %v1541 = vadd.s32 %v1523, %v1532
        %v1542 = vadd.s32 %v1524, %v1532
        %v1543 = vadd.s32 %v1525, %v1532
        %v1544 = vadd.s32 %v1526, %v1532
        %v1545 = vadd.s32 %v1527, %v1532
        %v1546 = vadd.s32 %v1528, %v1532
        %v1547 = vadd.s32 %v1529, %v1532
        %v1548 = vadd.s32 %v1530, %v1532
        %v1549 = vadd.s32 %v1531, %v1532
        %vm1550 = vcmp.ge.s32.totalorder %v1533, 0
        %vm1551 = vcmp.ge.s32.totalorder %v1534, 0
        %vm1552 = vcmp.ge.s32.totalorder %v1535, 0
        %vm1553 = vcmp.ge.s32.totalorder %v1536, 0
        %vm1554 = vcmp.ge.s32.totalorder %v1537, 0
        %vm1555 = vcmp.ge.s32.totalorder %v1538, 0
        %vm1556 = vcmp.ge.s32.totalorder %v1539, 0
        %vm1557 = vcmp.ge.s32.totalorder %v1540, 0
        %vm1558 = vcmp.ge.s32.totalorder %v1541, 0
        %vm1559 = vcmp.ge.s32.totalorder %v1542, 0
        %vm1560 = vcmp.ge.s32.totalorder %v1543, 0
        %vm1561 = vcmp.ge.s32.totalorder %v1544, 0
        %vm1562 = vcmp.ge.s32.totalorder %v1545, 0
        %vm1563 = vcmp.ge.s32.totalorder %v1546, 0
        %vm1564 = vcmp.ge.s32.totalorder %v1547, 0
        %vm1565 = vcmp.ge.s32.totalorder %v1548, 0
        %vm1566 = vcmp.ge.s32.totalorder %v1549, 0
        %vm1567 = vcmp.lt.s32.totalorder %v1533, 16
        %vm1568 = vcmp.lt.s32.totalorder %v1534, 16
        %vm1569 = vcmp.lt.s32.totalorder %v1535, 16
        %vm1570 = vcmp.lt.s32.totalorder %v1536, 16
        %vm1571 = vcmp.lt.s32.totalorder %v1537, 16
        %vm1572 = vcmp.lt.s32.totalorder %v1538, 16
        %vm1573 = vcmp.lt.s32.totalorder %v1539, 16
        %vm1574 = vcmp.lt.s32.totalorder %v1540, 16
        %vm1575 = vcmp.lt.s32.totalorder %v1541, 16
        %vm1576 = vcmp.lt.s32.totalorder %v1542, 16
        %vm1577 = vcmp.lt.s32.totalorder %v1543, 16
        %vm1578 = vcmp.lt.s32.totalorder %v1544, 16
        %vm1579 = vcmp.lt.s32.totalorder %v1545, 16
        %vm1580 = vcmp.lt.s32.totalorder %v1546, 16
        %vm1581 = vcmp.lt.s32.totalorder %v1547, 16
        %vm1582 = vcmp.lt.s32.totalorder %v1548, 16
        %vm1583 = vcmp.lt.s32.totalorder %v1549, 16
        %vm1584 = vmand %vm1550, %vm1567
        %vm1585 = vmand %vm1551, %vm1568
        %vm1586 = vmand %vm1552, %vm1569
        %vm1587 = vmand %vm1553, %vm1570
        %vm1588 = vmand %vm1554, %vm1571
        %vm1589 = vmand %vm1555, %vm1572
        %vm1590 = vmand %vm1556, %vm1573
        %vm1591 = vmand %vm1557, %vm1574
        %vm1592 = vmand %vm1558, %vm1575
        %vm1593 = vmand %vm1559, %vm1576
        %vm1594 = vmand %vm1560, %vm1577
        %vm1595 = vmand %vm1561, %vm1578
        %vm1596 = vmand %vm1562, %vm1579
        %vm1597 = vmand %vm1563, %vm1580
        %vm1598 = vmand %vm1564, %vm1581
        %vm1599 = vmand %vm1565, %vm1582
        %vm1600 = vmand %vm1566, %vm1583
        %v1601 = vsel %vm1584, 1, 0
        %v1602 = vsel %vm1585, 1, 0
        %v1603 = vsel %vm1586, 1, 0
        %v1604 = vsel %vm1587, 1, 0
        %v1605 = vsel %vm1588, 1, 0
        %v1606 = vsel %vm1589, 1, 0
        %v1607 = vsel %vm1590, 1, 0
        %v1608 = vsel %vm1591, 1, 0
        %v1609 = vsel %vm1592, 1, 0
        %v1610 = vsel %vm1593, 1, 0
        %v1611 = vsel %vm1594, 1, 0
        %v1612 = vsel %vm1595, 1, 0
        %v1613 = vsel %vm1596, 1, 0
        %v1614 = vsel %vm1597, 1, 0
        %v1615 = vsel %vm1598, 1, 0
        %v1616 = vsel %vm1599, 1, 0
        %v1617 = vsel %vm1600, 1, 0
        %vm1618 = vcmp.eq.s32.totalorder %v1601, 1
        %vm1619 = vcmp.eq.s32.totalorder %v1602, 1
        %vm1620 = vcmp.eq.s32.totalorder %v1603, 1
        %vm1621 = vcmp.eq.s32.totalorder %v1604, 1
        %vm1622 = vcmp.eq.s32.totalorder %v1605, 1
        %vm1623 = vcmp.eq.s32.totalorder %v1606, 1
        %vm1624 = vcmp.eq.s32.totalorder %v1607, 1
        %vm1625 = vcmp.eq.s32.totalorder %v1608, 1
        %vm1626 = vcmp.eq.s32.totalorder %v1609, 1
        %vm1627 = vcmp.eq.s32.totalorder %v1610, 1
        %vm1628 = vcmp.eq.s32.totalorder %v1611, 1
        %vm1629 = vcmp.eq.s32.totalorder %v1612, 1
        %vm1630 = vcmp.eq.s32.totalorder %v1613, 1
        %vm1631 = vcmp.eq.s32.totalorder %v1614, 1
        %vm1632 = vcmp.eq.s32.totalorder %v1615, 1
        %vm1633 = vcmp.eq.s32.totalorder %v1616, 1
        %vm1634 = vcmp.eq.s32.totalorder %v1617, 1
        %v1635 = vsel %vm1618, %v1495, 0.0
        %v1636 = vsel %vm1619, %v1496, 0.0
        %v1637 = vsel %vm1620, %v1497, 0.0
        %v1638 = vsel %vm1621, %v1498, 0.0
        %v1639 = vsel %vm1622, %v1499, 0.0
        %v1640 = vsel %vm1623, %v1500, 0.0
        %v1641 = vsel %vm1624, %v1501, 0.0
        %v1642 = vsel %vm1625, %v1502, 0.0
        %v1643 = vsel %vm1626, %v1503, 0.0
        %v1644 = vsel %vm1627, %v1504, 0.0
        %v1645 = vsel %vm1628, %v1505, 0.0
        %v1646 = vsel %vm1629, %v1506, 0.0
        %v1647 = vsel %vm1630, %v1507, 0.0
        %v1648 = vsel %vm1631, %v1508, 0.0
        %v1649 = vsel %vm1632, %v1509, 0.0
        %v1650 = vsel %vm1633, %v1510, 0.0
        %v1651 = vsel %vm1634, %v1511, 0.0
        %v1652 = vpack.c.bf16 %v1636, %v1635
        %v1653 = vpack.c.bf16 %v1638, %v1637
        %v1654 = vpack.c.bf16 %v1640, %v1639
        %v1655 = vpack.c.bf16 %v1642, %v1641
        %v1656 = vpack.c.bf16 %v1644, %v1643
        %v1657 = vpack.c.bf16 %v1646, %v1645
        %v1658 = vpack.c.bf16 %v1648, %v1647
        %v1659 = vpack.c.bf16 %v1650, %v1649
        %v1660 = vpack.c.bf16 %v1651, %v1651
        %v1661 = vld [vmem:[#allocation3] sm:$0xf]
        %v1662 = vld [vmem:[#allocation3 + $0x4] sm:$0xf]
        %v1663 = vld [vmem:[#allocation3 + $0x8] sm:$0xf]
        %v1664 = vld [vmem:[#allocation3 + $0xc] sm:$0xf]
        %v1665 = vld [vmem:[#allocation3 + $0x10] sm:$0xf]
        %v1666 = vld [vmem:[#allocation3 + $0x14] sm:$0xf]
        %v1667 = vld [vmem:[#allocation3 + $0x18] sm:$0xf]
        %v1668 = vld [vmem:[#allocation3 + $0x1c] sm:$0xf]
        %v1669 = vld [vmem:[#allocation3 + $0x20] sm:$0xf]
        %v1670 = vld [vmem:[#allocation3 + $0x24] sm:$0xf]
        %v1671 = vld [vmem:[#allocation3 + $0x28] sm:$0xf]
        %v1672 = vld [vmem:[#allocation3 + $0x2c] sm:$0xf]
        %v1673 = vld [vmem:[#allocation3 + $0x30] sm:$0xf]
        %v1674 = vld [vmem:[#allocation3 + $0x34] sm:$0xf]
        %v1675 = vld [vmem:[#allocation3 + $0x38] sm:$0xf]
        %v1676 = vld [vmem:[#allocation3 + $0x3c] sm:$0xf]
        %s1677 = scalar_lea.vmem [#allocation3], 64
        %v1678 = vld [vmem:[%s1677] sm:$0xf]
        %v1679 = vld [vmem:[%s1677 + $0x4] sm:$0xf]
        %v1680 = vld [vmem:[%s1677 + $0x8] sm:$0xf]
        %v1681 = vld [vmem:[%s1677 + $0xc] sm:$0xf]
        %v1682 = vld [vmem:[%s1677 + $0x10] sm:$0xf]
        %v1683 = vld [vmem:[%s1677 + $0x14] sm:$0xf]
        %v1684 = vld [vmem:[%s1677 + $0x18] sm:$0xf]
        %v1685 = vld [vmem:[%s1677 + $0x1c] sm:$0xf]
        %v1686 = vld [vmem:[%s1677 + $0x20] sm:$0xf]
        %v1687 = vld [vmem:[%s1677 + $0x24] sm:$0xf]
        %v1688 = vld [vmem:[%s1677 + $0x28] sm:$0xf]
        %v1689 = vld [vmem:[%s1677 + $0x2c] sm:$0xf]
        %v1690 = vld [vmem:[%s1677 + $0x30] sm:$0xf]
        %v1691 = vld [vmem:[%s1677 + $0x34] sm:$0xf]
        %v1692 = vld [vmem:[%s1677 + $0x38] sm:$0xf]
        %v1693 = vld [vmem:[%s1677 + $0x3c] sm:$0xf]
        %v1695 = vshrl.u32 %v1652, 16
        %v1697 = vshll.u32 %v1652, 16
        %v1699 = vrot.slane %v1697, 1
        %v1700 = vor.u32 %v1695, %v1699
        %v1702 = vshll.u32 %v1653, 16
        %v1704 = vrot.slane %v1702, 1
        %v1705 = vsel %vm575, %v1700, %v1704
        %v1706 = vshrl.u32 %v1653, 16
        %v1708 = vor.u32 %v1706, %v1704
        %v1710 = vshll.u32 %v1654, 16
        %v1712 = vrot.slane %v1710, 1
        %v1713 = vsel %vm575, %v1708, %v1712
        %v1714 = vshrl.u32 %v1654, 16
        %v1716 = vor.u32 %v1714, %v1712
        %v1718 = vshll.u32 %v1655, 16
        %v1720 = vrot.slane %v1718, 1
        %v1721 = vsel %vm575, %v1716, %v1720
        %v1722 = vshrl.u32 %v1655, 16
        %v1724 = vor.u32 %v1722, %v1720
        %v1726 = vshll.u32 %v1656, 16
        %v1728 = vrot.slane %v1726, 1
        %v1729 = vsel %vm575, %v1724, %v1728
        %v1730 = vshrl.u32 %v1656, 16
        %v1732 = vor.u32 %v1730, %v1728
        %v1734 = vshll.u32 %v1657, 16
        %v1736 = vrot.slane %v1734, 1
        %v1737 = vsel %vm575, %v1732, %v1736
        %v1738 = vshrl.u32 %v1657, 16
        %v1740 = vor.u32 %v1738, %v1736
        %v1742 = vshll.u32 %v1658, 16
        %v1744 = vrot.slane %v1742, 1
        %v1745 = vsel %vm575, %v1740, %v1744
        %v1746 = vshrl.u32 %v1658, 16
        %v1748 = vor.u32 %v1746, %v1744
        %v1750 = vshll.u32 %v1659, 16
        %v1752 = vrot.slane %v1750, 1
        %v1753 = vsel %vm575, %v1748, %v1752
        %v1754 = vshrl.u32 %v1659, 16
        %v1756 = vor.u32 %v1754, %v1752
        %v1758 = vshll.u32 %v1660, 16
        %v1760 = vrot.slane %v1758, 1
        %v1761 = vsel %vm575, %v1756, %v1760
        %v1786 = vunpack.c.l.b16 %v1678
        %v1787 = vunpack.c.l.b16 %v1679
        %v1788 = vunpack.c.l.b16 %v1680
        %v1789 = vunpack.c.l.b16 %v1681
        %v1790 = vunpack.c.l.b16 %v1682
        %v1791 = vunpack.c.l.b16 %v1683
        %v1792 = vunpack.c.l.b16 %v1684
        %v1793 = vunpack.c.l.b16 %v1685
        %v1794 = vunpack.c.l.b16 %v1686
        %v1795 = vunpack.c.l.b16 %v1687
        %v1796 = vunpack.c.l.b16 %v1688
        %v1797 = vunpack.c.l.b16 %v1689
        %v1798 = vunpack.c.l.b16 %v1690
        %v1799 = vunpack.c.l.b16 %v1691
        %v1800 = vunpack.c.l.b16 %v1692
        %v1801 = vunpack.c.l.b16 %v1693
        %v1802 = vpack.c.b16 %v1787, %v1786
        %v1803 = vpack.c.b16 %v1789, %v1788
        %v1804 = vpack.c.b16 %v1791, %v1790
        %v1805 = vpack.c.b16 %v1793, %v1792
        %v1806 = vpack.c.b16 %v1795, %v1794
        %v1807 = vpack.c.b16 %v1797, %v1796
        %v1808 = vpack.c.b16 %v1799, %v1798
        %v1809 = vpack.c.b16 %v1801, %v1800
        %1818 = vmatprep.subr.bf16.mxu0 0
        %1819 = vmatpush1.bf16.msra.mxu0 %v1802
        %1820 = vmatprep.subr.bf16.mxu0 0
        %1821 = vmatpush1.bf16.msra.mxu0 %v1803
        %1822 = vmatprep.subr.bf16.mxu0 0
        %1823 = vmatpush1.bf16.msra.mxu0 %v1804
        %1824 = vmatprep.subr.bf16.mxu0 0
        %1825 = vmatpush1.bf16.msra.mxu0 %v1805
        %1826 = vmatprep.subr.bf16.mxu0 0
        %1827 = vmatpush1.bf16.msra.mxu0 %v1806
        %1828 = vmatprep.subr.bf16.mxu0 0
        %1829 = vmatpush1.bf16.msra.mxu0 %v1807
        %1830 = vmatprep.subr.bf16.mxu0 0
        %1831 = vmatpush1.bf16.msra.mxu0 %v1808
        %1832 = vmatprep.subr.bf16.mxu0 0
        %1833 = vmatpush1.bf16.msra.mxu0 %v1809
        %1834 = vmatprep.subr.bf16.mxu0 0
        %1835 = vmatpush1.bf16.msra.mxu0 0
        %1836 = vmatprep.subr.bf16.mxu0 0
        %1837 = vmatpush1.bf16.msra.mxu0 0
        %1838 = vmatprep.subr.bf16.mxu0 0
        %1839 = vmatpush1.bf16.msra.mxu0 0
        %1840 = vmatprep.subr.bf16.mxu0 0
        %1841 = vmatpush1.bf16.msra.mxu0 0
        %1842 = vmatprep.subr.bf16.mxu0 0
        %1843 = vmatpush1.bf16.msra.mxu0 0
        %1844 = vmatprep.subr.bf16.mxu0 0
        %1845 = vmatpush1.bf16.msra.mxu0 0
        %1846 = vmatprep.subr.bf16.mxu0 0
        %1847 = vmatpush1.bf16.msra.mxu0 0
        %1848 = vmatprep.subr.bf16.mxu0 0
        %1849 = vmatpush1.bf16.msra.mxu0 0
        %1850 = vmatprep.mubr.bf16.mxu0 0
        %1851 = vmatmul.mubr.bf16.gmra.mrb[0].mxu0 %v1705
        %v1852 = vpop.f32.mrb[0].mxu0
        %v1853 = vadd.f32 0.0, %v1852
        %v1854 = vpop.f32.mrb[0].mxu0
        %v1855 = vpop.f32.mrb[0].mxu0
        %v1856 = vadd.f32 0.0, %v1855
        %v1857 = vpop.f32.mrb[0].mxu0
        %1858 = vmatprep.mubr.bf16.mxu0 0
        %1859 = vmatmul.mubr.bf16.gmra.mrb[0].mxu0 %v1713
        %v1860 = vpop.f32.mrb[0].mxu0
        %v1861 = vadd.f32 0.0, %v1860
        %v1862 = vpop.f32.mrb[0].mxu0
        %v1863 = vpop.f32.mrb[0].mxu0
        %v1864 = vadd.f32 0.0, %v1863
        %v1865 = vpop.f32.mrb[0].mxu0
        %1866 = vmatprep.mubr.bf16.mxu0 0
        %1867 = vmatmul.mubr.bf16.gmra.mrb[0].mxu0 %v1721
        %v1868 = vpop.f32.mrb[0].mxu0
        %v1869 = vadd.f32 0.0, %v1868
        %v1870 = vpop.f32.mrb[0].mxu0
        %v1871 = vpop.f32.mrb[0].mxu0
        %v1872 = vadd.f32 0.0, %v1871
        %v1873 = vpop.f32.mrb[0].mxu0
        %1874 = vmatprep.mubr.bf16.mxu0 0
        %1875 = vmatmul.mubr.bf16.gmra.mrb[0].mxu0 %v1729
        %v1876 = vpop.f32.mrb[0].mxu0
        %v1877 = vadd.f32 0.0, %v1876
        %v1878 = vpop.f32.mrb[0].mxu0
        %v1879 = vpop.f32.mrb[0].mxu0
        %v1880 = vadd.f32 0.0, %v1879
        %v1881 = vpop.f32.mrb[0].mxu0
        %1882 = vmatprep.mubr.bf16.mxu0 0
        %1883 = vmatmul.mubr.bf16.gmra.mrb[0].mxu0 %v1737
        %v1884 = vpop.f32.mrb[0].mxu0
        %v1885 = vadd.f32 0.0, %v1884
        %v1886 = vpop.f32.mrb[0].mxu0
        %v1887 = vpop.f32.mrb[0].mxu0
        %v1888 = vadd.f32 0.0, %v1887
        %v1889 = vpop.f32.mrb[0].mxu0
        %1890 = vmatprep.mubr.bf16.mxu0 0
        %1891 = vmatmul.mubr.bf16.gmra.mrb[0].mxu0 %v1745
        %v1892 = vpop.f32.mrb[0].mxu0
        %v1893 = vadd.f32 0.0, %v1892
        %v1894 = vpop.f32.mrb[0].mxu0
        %v1895 = vpop.f32.mrb[0].mxu0
        %v1896 = vadd.f32 0.0, %v1895
        %v1897 = vpop.f32.mrb[0].mxu0
        %1898 = vmatprep.mubr.bf16.mxu0 0
        %1899 = vmatmul.mubr.bf16.gmra.mrb[0].mxu0 %v1753
        %v1900 = vpop.f32.mrb[0].mxu0
        %v1901 = vadd.f32 0.0, %v1900
        %v1902 = vpop.f32.mrb[0].mxu0
        %v1903 = vpop.f32.mrb[0].mxu0
        %v1904 = vadd.f32 0.0, %v1903
        %v1905 = vpop.f32.mrb[0].mxu0
        %1906 = vmatprep.mubr.bf16.mxu0 0
        %1907 = vmatmul.mubr.bf16.gmra.mrb[0].mxu0 %v1761
        %v1908 = vpop.f32.mrb[0].mxu0
        %v1909 = vadd.f32 0.0, %v1908
        %v1910 = vpop.f32.mrb[0].mxu0
        %v1911 = vpop.f32.mrb[0].mxu0
        %v1912 = vadd.f32 0.0, %v1911
        %v1913 = vpop.f32.mrb[0].mxu0
        %1914 = vdwg.mxu0
        %v1931 = vunpack.c.l.b16 %v1661
        %v1932 = vunpack.c.l.b16 %v1662
        %v1933 = vunpack.c.l.b16 %v1663
        %v1934 = vunpack.c.l.b16 %v1664
        %v1935 = vunpack.c.l.b16 %v1665
        %v1936 = vunpack.c.l.b16 %v1666
        %v1937 = vunpack.c.l.b16 %v1667
        %v1938 = vunpack.c.l.b16 %v1668
        %v1939 = vunpack.c.l.b16 %v1669
        %v1940 = vunpack.c.l.b16 %v1670
        %v1941 = vunpack.c.l.b16 %v1671
        %v1942 = vunpack.c.l.b16 %v1672
        %v1943 = vunpack.c.l.b16 %v1673
        %v1944 = vunpack.c.l.b16 %v1674
        %v1945 = vunpack.c.l.b16 %v1675
        %v1946 = vunpack.c.l.b16 %v1676
        %v1947 = vpack.c.b16 %v1932, %v1931
        %v1948 = vpack.c.b16 %v1934, %v1933
        %v1949 = vpack.c.b16 %v1936, %v1935
        %v1950 = vpack.c.b16 %v1938, %v1937
        %v1951 = vpack.c.b16 %v1940, %v1939
        %v1952 = vpack.c.b16 %v1942, %v1941
        %v1953 = vpack.c.b16 %v1944, %v1943
        %v1954 = vpack.c.b16 %v1946, %v1945
        %1963 = vmatprep.subr.bf16.mxu0 0
        %1964 = vmatpush1.bf16.msra.mxu0 %v1947
        %1965 = vmatprep.subr.bf16.mxu0 0
        %1966 = vmatpush1.bf16.msra.mxu0 %v1948
        %1967 = vmatprep.subr.bf16.mxu0 0
        %1968 = vmatpush1.bf16.msra.mxu0 %v1949
        %1969 = vmatprep.subr.bf16.mxu0 0
        %1970 = vmatpush1.bf16.msra.mxu0 %v1950
        %1971 = vmatprep.subr.bf16.mxu0 0
        %1972 = vmatpush1.bf16.msra.mxu0 %v1951
        %1973 = vmatprep.subr.bf16.mxu0 0
        %1974 = vmatpush1.bf16.msra.mxu0 %v1952
        %1975 = vmatprep.subr.bf16.mxu0 0
        %1976 = vmatpush1.bf16.msra.mxu0 %v1953
        %1977 = vmatprep.subr.bf16.mxu0 0
        %1978 = vmatpush1.bf16.msra.mxu0 %v1954
        %1979 = vmatprep.subr.bf16.mxu0 0
        %1980 = vmatpush1.bf16.msra.mxu0 0
        %1981 = vmatprep.subr.bf16.mxu0 0
        %1982 = vmatpush1.bf16.msra.mxu0 0
        %1983 = vmatprep.subr.bf16.mxu0 0
        %1984 = vmatpush1.bf16.msra.mxu0 0
        %1985 = vmatprep.subr.bf16.mxu0 0
        %1986 = vmatpush1.bf16.msra.mxu0 0
        %1987 = vmatprep.subr.bf16.mxu0 0
        %1988 = vmatpush1.bf16.msra.mxu0 0
        %1989 = vmatprep.subr.bf16.mxu0 0
        %1990 = vmatpush1.bf16.msra.mxu0 0
        %1991 = vmatprep.subr.bf16.mxu0 0
        %1992 = vmatpush1.bf16.msra.mxu0 0
        %1993 = vmatprep.subr.bf16.mxu0 0
        %1994 = vmatpush1.bf16.msra.mxu0 0
        %1995 = vmatprep.mubr.bf16.mxu0 0
        %1996 = vmatmul.mubr.bf16.gmra.mrb[0].mxu0 %v1652
        %v1997 = vpop.f32.mrb[0].mxu0
        %v1998 = vadd.f32 %v1853, %v1997
        %v1999 = vpop.f32.mrb[0].mxu0
        %v2000 = vpop.f32.mrb[0].mxu0
        %v2001 = vadd.f32 %v1856, %v2000
        %v2002 = vpop.f32.mrb[0].mxu0
        %2003 = vmatprep.mubr.bf16.mxu0 0
        %2004 = vmatmul.mubr.bf16.gmra.mrb[0].mxu0 %v1653
        %v2005 = vpop.f32.mrb[0].mxu0
        %v2006 = vadd.f32 %v1861, %v2005
        %v2007 = vpop.f32.mrb[0].mxu0
        %v2008 = vpop.f32.mrb[0].mxu0
        %v2009 = vadd.f32 %v1864, %v2008
        %v2010 = vpop.f32.mrb[0].mxu0
        %2011 = vmatprep.mubr.bf16.mxu0 0
        %2012 = vmatmul.mubr.bf16.gmra.mrb[0].mxu0 %v1654
        %v2013 = vpop.f32.mrb[0].mxu0
        %v2014 = vadd.f32 %v1869, %v2013
        %v2015 = vpop.f32.mrb[0].mxu0
        %v2016 = vpop.f32.mrb[0].mxu0
        %v2017 = vadd.f32 %v1872, %v2016
        %v2018 = vpop.f32.mrb[0].mxu0
        %2019 = vmatprep.mubr.bf16.mxu0 0
        %2020 = vmatmul.mubr.bf16.gmra.mrb[0].mxu0 %v1655
        %v2021 = vpop.f32.mrb[0].mxu0
        %v2022 = vadd.f32 %v1877, %v2021
        %v2023 = vpop.f32.mrb[0].mxu0
        %v2024 = vpop.f32.mrb[0].mxu0
        %v2025 = vadd.f32 %v1880, %v2024
        %v2026 = vpop.f32.mrb[0].mxu0
        %2027 = vmatprep.mubr.bf16.mxu0 0
        %2028 = vmatmul.mubr.bf16.gmra.mrb[0].mxu0 %v1656
        %v2029 = vpop.f32.mrb[0].mxu0
        %v2030 = vadd.f32 %v1885, %v2029
        %v2031 = vpop.f32.mrb[0].mxu0
        %v2032 = vpop.f32.mrb[0].mxu0
        %v2033 = vadd.f32 %v1888, %v2032
        %v2034 = vpop.f32.mrb[0].mxu0
        %2035 = vmatprep.mubr.bf16.mxu0 0
        %2036 = vmatmul.mubr.bf16.gmra.mrb[0].mxu0 %v1657
        %v2037 = vpop.f32.mrb[0].mxu0
        %v2038 = vadd.f32 %v1893, %v2037
        %v2039 = vpop.f32.mrb[0].mxu0
        %v2040 = vpop.f32.mrb[0].mxu0
        %v2041 = vadd.f32 %v1896, %v2040
        %v2042 = vpop.f32.mrb[0].mxu0
        %2043 = vmatprep.mubr.bf16.mxu0 0
        %2044 = vmatmul.mubr.bf16.gmra.mrb[0].mxu0 %v1658
        %v2045 = vpop.f32.mrb[0].mxu0
        %v2046 = vadd.f32 %v1901, %v2045
        %v2047 = vpop.f32.mrb[0].mxu0
        %v2048 = vpop.f32.mrb[0].mxu0
        %v2049 = vadd.f32 %v1904, %v2048
        %v2050 = vpop.f32.mrb[0].mxu0
        %2051 = vmatprep.mubr.bf16.mxu0 0
        %2052 = vmatmul.mubr.bf16.gmra.mrb[0].mxu0 %v1659
        %v2053 = vpop.f32.mrb[0].mxu0
        %v2054 = vadd.f32 %v1909, %v2053
        %v2055 = vpop.f32.mrb[0].mxu0
        %v2056 = vpop.f32.mrb[0].mxu0
        %v2057 = vadd.f32 %v1912, %v2056
        %v2058 = vpop.f32.mrb[0].mxu0
        %2059 = vdwg.mxu0
        %s2060 = scalar_lea.vmem [#allocation3], 128
        %v2061 = vld [vmem:[%s2060] sm:$0xf]
        %v2062 = vld [vmem:[%s2060 + $0x4] sm:$0xf]
        %v2063 = vld [vmem:[%s2060 + $0x8] sm:$0xf]
        %v2064 = vld [vmem:[%s2060 + $0xc] sm:$0xf]
        %v2065 = vld [vmem:[%s2060 + $0x10] sm:$0xf]
        %v2066 = vld [vmem:[%s2060 + $0x14] sm:$0xf]
        %v2067 = vld [vmem:[%s2060 + $0x18] sm:$0xf]
        %v2068 = vld [vmem:[%s2060 + $0x1c] sm:$0xf]
        %v2069 = vld [vmem:[%s2060 + $0x20] sm:$0xf]
        %v2070 = vld [vmem:[%s2060 + $0x24] sm:$0xf]
        %v2071 = vld [vmem:[%s2060 + $0x28] sm:$0xf]
        %v2072 = vld [vmem:[%s2060 + $0x2c] sm:$0xf]
        %v2073 = vld [vmem:[%s2060 + $0x30] sm:$0xf]
        %v2074 = vld [vmem:[%s2060 + $0x34] sm:$0xf]
        %v2075 = vld [vmem:[%s2060 + $0x38] sm:$0xf]
        %v2076 = vld [vmem:[%s2060 + $0x3c] sm:$0xf]
        %v2086 = vrot.slane %v1652, 1
        %v2087 = vrot.slane %v1653, 1
        %v2088 = vsel %vm986, %v2086, %v2087
        %v2089 = vrot.slane %v1654, 1
        %v2090 = vsel %vm986, %v2087, %v2089
        %v2091 = vrot.slane %v1655, 1
        %v2092 = vsel %vm986, %v2089, %v2091
        %v2093 = vrot.slane %v1656, 1
        %v2094 = vsel %vm986, %v2091, %v2093
        %v2095 = vrot.slane %v1657, 1
        %v2096 = vsel %vm986, %v2093, %v2095
        %v2097 = vrot.slane %v1658, 1
        %v2098 = vsel %vm986, %v2095, %v2097
        %v2099 = vrot.slane %v1659, 1
        %v2100 = vsel %vm986, %v2097, %v2099
        %v2101 = vrot.slane %v1660, 1
        %v2102 = vsel %vm986, %v2099, %v2101
        %v2127 = vunpack.c.l.b16 %v2061
        %v2128 = vunpack.c.l.b16 %v2062
        %v2129 = vunpack.c.l.b16 %v2063
        %v2130 = vunpack.c.l.b16 %v2064
        %v2131 = vunpack.c.l.b16 %v2065
        %v2132 = vunpack.c.l.b16 %v2066
        %v2133 = vunpack.c.l.b16 %v2067
        %v2134 = vunpack.c.l.b16 %v2068
        %v2135 = vunpack.c.l.b16 %v2069
        %v2136 = vunpack.c.l.b16 %v2070
        %v2137 = vunpack.c.l.b16 %v2071
        %v2138 = vunpack.c.l.b16 %v2072
        %v2139 = vunpack.c.l.b16 %v2073
        %v2140 = vunpack.c.l.b16 %v2074
        %v2141 = vunpack.c.l.b16 %v2075
        %v2142 = vunpack.c.l.b16 %v2076
        %v2143 = vpack.c.b16 %v2128, %v2127
        %v2144 = vpack.c.b16 %v2130, %v2129
        %v2145 = vpack.c.b16 %v2132, %v2131
        %v2146 = vpack.c.b16 %v2134, %v2133
        %v2147 = vpack.c.b16 %v2136, %v2135
        %v2148 = vpack.c.b16 %v2138, %v2137
        %v2149 = vpack.c.b16 %v2140, %v2139
        %v2150 = vpack.c.b16 %v2142, %v2141
        %2159 = vmatprep.subr.bf16.mxu0 0
        %2160 = vmatpush1.bf16.msra.mxu0 %v2143
        %2161 = vmatprep.subr.bf16.mxu0 0
        %2162 = vmatpush1.bf16.msra.mxu0 %v2144
        %2163 = vmatprep.subr.bf16.mxu0 0
        %2164 = vmatpush1.bf16.msra.mxu0 %v2145
        %2165 = vmatprep.subr.bf16.mxu0 0
        %2166 = vmatpush1.bf16.msra.mxu0 %v2146
        %2167 = vmatprep.subr.bf16.mxu0 0
        %2168 = vmatpush1.bf16.msra.mxu0 %v2147
        %2169 = vmatprep.subr.bf16.mxu0 0
        %2170 = vmatpush1.bf16.msra.mxu0 %v2148
        %2171 = vmatprep.subr.bf16.mxu0 0
        %2172 = vmatpush1.bf16.msra.mxu0 %v2149
        %2173 = vmatprep.subr.bf16.mxu0 0
        %2174 = vmatpush1.bf16.msra.mxu0 %v2150
        %2175 = vmatprep.subr.bf16.mxu0 0
        %2176 = vmatpush1.bf16.msra.mxu0 0
        %2177 = vmatprep.subr.bf16.mxu0 0
        %2178 = vmatpush1.bf16.msra.mxu0 0
        %2179 = vmatprep.subr.bf16.mxu0 0
        %2180 = vmatpush1.bf16.msra.mxu0 0
        %2181 = vmatprep.subr.bf16.mxu0 0
        %2182 = vmatpush1.bf16.msra.mxu0 0
        %2183 = vmatprep.subr.bf16.mxu0 0
        %2184 = vmatpush1.bf16.msra.mxu0 0
        %2185 = vmatprep.subr.bf16.mxu0 0
        %2186 = vmatpush1.bf16.msra.mxu0 0
        %2187 = vmatprep.subr.bf16.mxu0 0
        %2188 = vmatpush1.bf16.msra.mxu0 0
        %2189 = vmatprep.subr.bf16.mxu0 0
        %2190 = vmatpush1.bf16.msra.mxu0 0
        %2191 = vmatprep.mubr.bf16.mxu0 0
        %2192 = vmatmul.mubr.bf16.gmra.mrb[0].mxu0 %v2088
        %v2193 = vpop.f32.mrb[0].mxu0
        %v2194 = vadd.f32 0.0, %v2193
        %v2195 = vpop.f32.mrb[0].mxu0
        %v2196 = vpop.f32.mrb[0].mxu0
        %v2197 = vadd.f32 0.0, %v2196
        %v2198 = vpop.f32.mrb[0].mxu0
        %2199 = vmatprep.mubr.bf16.mxu0 0
        %2200 = vmatmul.mubr.bf16.gmra.mrb[0].mxu0 %v2090
        %v2201 = vpop.f32.mrb[0].mxu0
        %v2202 = vadd.f32 0.0, %v2201
        %v2203 = vpop.f32.mrb[0].mxu0
        %v2204 = vpop.f32.mrb[0].mxu0
        %v2205 = vadd.f32 0.0, %v2204
        %v2206 = vpop.f32.mrb[0].mxu0
        %2207 = vmatprep.mubr.bf16.mxu0 0
        %2208 = vmatmul.mubr.bf16.gmra.mrb[0].mxu0 %v2092
        %v2209 = vpop.f32.mrb[0].mxu0
        %v2210 = vadd.f32 0.0, %v2209
        %v2211 = vpop.f32.mrb[0].mxu0
        %v2212 = vpop.f32.mrb[0].mxu0
        %v2213 = vadd.f32 0.0, %v2212
        %v2214 = vpop.f32.mrb[0].mxu0
        %2215 = vmatprep.mubr.bf16.mxu0 0
        %2216 = vmatmul.mubr.bf16.gmra.mrb[0].mxu0 %v2094
        %v2217 = vpop.f32.mrb[0].mxu0
        %v2218 = vadd.f32 0.0, %v2217
        %v2219 = vpop.f32.mrb[0].mxu0
        %v2220 = vpop.f32.mrb[0].mxu0
        %v2221 = vadd.f32 0.0, %v2220
        %v2222 = vpop.f32.mrb[0].mxu0
        %2223 = vmatprep.mubr.bf16.mxu0 0
        %2224 = vmatmul.mubr.bf16.gmra.mrb[0].mxu0 %v2096
        %v2225 = vpop.f32.mrb[0].mxu0
        %v2226 = vadd.f32 0.0, %v2225
        %v2227 = vpop.f32.mrb[0].mxu0
        %v2228 = vpop.f32.mrb[0].mxu0
        %v2229 = vadd.f32 0.0, %v2228
        %v2230 = vpop.f32.mrb[0].mxu0
        %2231 = vmatprep.mubr.bf16.mxu0 0
        %2232 = vmatmul.mubr.bf16.gmra.mrb[0].mxu0 %v2098
        %v2233 = vpop.f32.mrb[0].mxu0
        %v2234 = vadd.f32 0.0, %v2233
        %v2235 = vpop.f32.mrb[0].mxu0
        %v2236 = vpop.f32.mrb[0].mxu0
        %v2237 = vadd.f32 0.0, %v2236
        %v2238 = vpop.f32.mrb[0].mxu0
        %2239 = vmatprep.mubr.bf16.mxu0 0
        %2240 = vmatmul.mubr.bf16.gmra.mrb[0].mxu0 %v2100
        %v2241 = vpop.f32.mrb[0].mxu0
        %v2242 = vadd.f32 0.0, %v2241
        %v2243 = vpop.f32.mrb[0].mxu0
        %v2244 = vpop.f32.mrb[0].mxu0
        %v2245 = vadd.f32 0.0, %v2244
        %v2246 = vpop.f32.mrb[0].mxu0
        %2247 = vmatprep.mubr.bf16.mxu0 0
        %2248 = vmatmul.mubr.bf16.gmra.mrb[0].mxu0 %v2102
        %v2249 = vpop.f32.mrb[0].mxu0
        %v2250 = vadd.f32 0.0, %v2249
        %v2251 = vpop.f32.mrb[0].mxu0
        %v2252 = vpop.f32.mrb[0].mxu0
        %v2253 = vadd.f32 0.0, %v2252
        %v2254 = vpop.f32.mrb[0].mxu0
        %2255 = vdwg.mxu0
        %v2256 = vadd.f32 %v1998, %v2194
        %v2257 = vadd.f32 %v2001, %v2197
        %v2258 = vadd.f32 %v2006, %v2202
        %v2259 = vadd.f32 %v2009, %v2205
        %v2260 = vadd.f32 %v2014, %v2210
        %v2261 = vadd.f32 %v2017, %v2213
        %v2262 = vadd.f32 %v2022, %v2218
        %v2263 = vadd.f32 %v2025, %v2221
        %v2264 = vadd.f32 %v2030, %v2226
        %v2265 = vadd.f32 %v2033, %v2229
        %v2266 = vadd.f32 %v2038, %v2234
        %v2267 = vadd.f32 %v2041, %v2237
        %v2268 = vadd.f32 %v2046, %v2242
        %v2269 = vadd.f32 %v2049, %v2245
        %v2270 = vadd.f32 %v2054, %v2250
        %v2271 = vadd.f32 %v2057, %v2253
        %v2272 = vld [vmem:[%s7] sm:$0x1]
        %v2274 = vlaneseq
        %v2275 = vshrl.u32 %v2274, 7
        %v2276 = vsub.s32 0, %v2275
        %v2277 = vrot.slane %v2272, %v2276
        %v2279 = vadd.f32 %v2256, %v2277
        %v2280 = vadd.f32 %v2257, %v2277
        %v2281 = vadd.f32 %v2258, %v2277
        %v2282 = vadd.f32 %v2259, %v2277
        %v2283 = vadd.f32 %v2260, %v2277
        %v2284 = vadd.f32 %v2261, %v2277
        %v2285 = vadd.f32 %v2262, %v2277
        %v2286 = vadd.f32 %v2263, %v2277
        %v2287 = vadd.f32 %v2264, %v2277
        %v2288 = vadd.f32 %v2265, %v2277
        %v2289 = vadd.f32 %v2266, %v2277
        %v2290 = vadd.f32 %v2267, %v2277
        %v2291 = vadd.f32 %v2268, %v2277
        %v2292 = vadd.f32 %v2269, %v2277
        %v2293 = vadd.f32 %v2270, %v2277
        %v2294 = vadd.f32 %v2271, %v2277
        %v2295 = vmax.f32 %v2279, 0.0
        %v2296 = vmax.f32 %v2280, 0.0
        %v2297 = vmax.f32 %v2281, 0.0
        %v2298 = vmax.f32 %v2282, 0.0
        %v2299 = vmax.f32 %v2283, 0.0
        %v2300 = vmax.f32 %v2284, 0.0
        %v2301 = vmax.f32 %v2285, 0.0
        %v2302 = vmax.f32 %v2286, 0.0
        %v2303 = vmax.f32 %v2287, 0.0
        %v2304 = vmax.f32 %v2288, 0.0
        %v2305 = vmax.f32 %v2289, 0.0
        %v2306 = vmax.f32 %v2290, 0.0
        %v2307 = vmax.f32 %v2291, 0.0
        %v2308 = vmax.f32 %v2292, 0.0
        %v2309 = vmax.f32 %v2293, 0.0
        %v2310 = vmax.f32 %v2294, 0.0
        %2311 = vadd.xlane.f32.xlu0 %v2295
        %v2312 = vpop.xlane.xlu0 %2311
        %2313 = vadd.xlane.f32.xlu0 %v2296
        %v2314 = vpop.xlane.xlu0 %2313
        %2315 = vadd.xlane.f32.xlu0 %v2297
        %v2316 = vpop.xlane.xlu0 %2315
        %2317 = vadd.xlane.f32.xlu0 %v2298
        %v2318 = vpop.xlane.xlu0 %2317
        %2319 = vadd.xlane.f32.xlu0 %v2299
        %v2320 = vpop.xlane.xlu0 %2319
        %2321 = vadd.xlane.f32.xlu0 %v2300
        %v2322 = vpop.xlane.xlu0 %2321
        %2323 = vadd.xlane.f32.xlu0 %v2301
        %v2324 = vpop.xlane.xlu0 %2323
        %2325 = vadd.xlane.f32.xlu0 %v2302
        %v2326 = vpop.xlane.xlu0 %2325
        %2327 = vadd.xlane.f32.xlu0 %v2303
        %v2328 = vpop.xlane.xlu0 %2327
        %2329 = vadd.xlane.f32.xlu0 %v2304
        %v2330 = vpop.xlane.xlu0 %2329
        %2331 = vadd.xlane.f32.xlu0 %v2305
        %v2332 = vpop.xlane.xlu0 %2331
        %2333 = vadd.xlane.f32.xlu0 %v2306
        %v2334 = vpop.xlane.xlu0 %2333
        %2335 = vadd.xlane.f32.xlu0 %v2307
        %v2336 = vpop.xlane.xlu0 %2335
        %2337 = vadd.xlane.f32.xlu0 %v2308
        %v2338 = vpop.xlane.xlu0 %2337
        %2339 = vadd.xlane.f32.xlu0 %v2309
        %v2340 = vpop.xlane.xlu0 %2339
        %2341 = vadd.xlane.f32.xlu0 %v2310
        %v2342 = vpop.xlane.xlu0 %2341
        %v2343 = vmul.f32 %v2312, 0.03125
        %v2344 = vmul.f32 %v2314, 0.03125
        %v2345 = vmul.f32 %v2316, 0.03125
        %v2346 = vmul.f32 %v2318, 0.03125
        %v2347 = vmul.f32 %v2320, 0.03125
        %v2348 = vmul.f32 %v2322, 0.03125
        %v2349 = vmul.f32 %v2324, 0.03125
        %v2350 = vmul.f32 %v2326, 0.03125
        %v2351 = vmul.f32 %v2328, 0.03125
        %v2352 = vmul.f32 %v2330, 0.03125
        %v2353 = vmul.f32 %v2332, 0.03125
        %v2354 = vmul.f32 %v2334, 0.03125
        %v2355 = vmul.f32 %v2336, 0.03125
        %v2356 = vmul.f32 %v2338, 0.03125
        %v2357 = vmul.f32 %v2340, 0.03125
        %v2358 = vmul.f32 %v2342, 0.03125
        %v2359 = vmul.f32 %v2295, %v2295
        %v2360 = vmul.f32 %v2296, %v2296
        %v2361 = vmul.f32 %v2297, %v2297
        %v2362 = vmul.f32 %v2298, %v2298
        %v2363 = vmul.f32 %v2299, %v2299
        %v2364 = vmul.f32 %v2300, %v2300
        %v2365 = vmul.f32 %v2301, %v2301
        %v2366 = vmul.f32 %v2302, %v2302
        %v2367 = vmul.f32 %v2303, %v2303
        %v2368 = vmul.f32 %v2304, %v2304
        %v2369 = vmul.f32 %v2305, %v2305
        %v2370 = vmul.f32 %v2306, %v2306
        %v2371 = vmul.f32 %v2307, %v2307
        %v2372 = vmul.f32 %v2308, %v2308
        %v2373 = vmul.f32 %v2309, %v2309
        %v2374 = vmul.f32 %v2310, %v2310
        %2375 = vadd.xlane.f32.xlu0 %v2359
        %v2376 = vpop.xlane.xlu0 %2375
        %2377 = vadd.xlane.f32.xlu0 %v2360
        %v2378 = vpop.xlane.xlu0 %2377
        %2379 = vadd.xlane.f32.xlu0 %v2361
        %v2380 = vpop.xlane.xlu0 %2379
        %2381 = vadd.xlane.f32.xlu0 %v2362
        %v2382 = vpop.xlane.xlu0 %2381
        %2383 = vadd.xlane.f32.xlu0 %v2363
        %v2384 = vpop.xlane.xlu0 %2383
        %2385 = vadd.xlane.f32.xlu0 %v2364
        %v2386 = vpop.xlane.xlu0 %2385
        %2387 = vadd.xlane.f32.xlu0 %v2365
        %v2388 = vpop.xlane.xlu0 %2387
        %2389 = vadd.xlane.f32.xlu0 %v2366
        %v2390 = vpop.xlane.xlu0 %2389
        %2391 = vadd.xlane.f32.xlu0 %v2367
        %v2392 = vpop.xlane.xlu0 %2391
        %2393 = vadd.xlane.f32.xlu0 %v2368
        %v2394 = vpop.xlane.xlu0 %2393
        %2395 = vadd.xlane.f32.xlu0 %v2369
        %v2396 = vpop.xlane.xlu0 %2395
        %2397 = vadd.xlane.f32.xlu0 %v2370
        %v2398 = vpop.xlane.xlu0 %2397
        %2399 = vadd.xlane.f32.xlu0 %v2371
        %v2400 = vpop.xlane.xlu0 %2399
        %2401 = vadd.xlane.f32.xlu0 %v2372
        %v2402 = vpop.xlane.xlu0 %2401
        %2403 = vadd.xlane.f32.xlu0 %v2373
        %v2404 = vpop.xlane.xlu0 %2403
        %2405 = vadd.xlane.f32.xlu0 %v2374
        %v2406 = vpop.xlane.xlu0 %2405
        %v2407 = vmul.f32 %v2376, 0.03125
        %v2408 = vmul.f32 %v2378, 0.03125
        %v2409 = vmul.f32 %v2380, 0.03125
        %v2410 = vmul.f32 %v2382, 0.03125
        %v2411 = vmul.f32 %v2384, 0.03125
        %v2412 = vmul.f32 %v2386, 0.03125
        %v2413 = vmul.f32 %v2388, 0.03125
        %v2414 = vmul.f32 %v2390, 0.03125
        %v2415 = vmul.f32 %v2392, 0.03125
        %v2416 = vmul.f32 %v2394, 0.03125
        %v2417 = vmul.f32 %v2396, 0.03125
        %v2418 = vmul.f32 %v2398, 0.03125
        %v2419 = vmul.f32 %v2400, 0.03125
        %v2420 = vmul.f32 %v2402, 0.03125
        %v2421 = vmul.f32 %v2404, 0.03125
        %v2422 = vmul.f32 %v2406, 0.03125
        %v2423 = vmul.f32 %v2343, %v2343
        %v2424 = vmul.f32 %v2344, %v2344
        %v2425 = vmul.f32 %v2345, %v2345
        %v2426 = vmul.f32 %v2346, %v2346
        %v2427 = vmul.f32 %v2347, %v2347
        %v2428 = vmul.f32 %v2348, %v2348
        %v2429 = vmul.f32 %v2349, %v2349
        %v2430 = vmul.f32 %v2350, %v2350
        %v2431 = vmul.f32 %v2351, %v2351
        %v2432 = vmul.f32 %v2352, %v2352
        %v2433 = vmul.f32 %v2353, %v2353
        %v2434 = vmul.f32 %v2354, %v2354
        %v2435 = vmul.f32 %v2355, %v2355
        %v2436 = vmul.f32 %v2356, %v2356
        %v2437 = vmul.f32 %v2357, %v2357
        %v2438 = vmul.f32 %v2358, %v2358
        %v2439 = vsub.f32 %v2407, %v2423
        %v2440 = vsub.f32 %v2408, %v2424
        %v2441 = vsub.f32 %v2409, %v2425
        %v2442 = vsub.f32 %v2410, %v2426
        %v2443 = vsub.f32 %v2411, %v2427
        %v2444 = vsub.f32 %v2412, %v2428
        %v2445 = vsub.f32 %v2413, %v2429
        %v2446 = vsub.f32 %v2414, %v2430
        %v2447 = vsub.f32 %v2415, %v2431
        %v2448 = vsub.f32 %v2416, %v2432
        %v2449 = vsub.f32 %v2417, %v2433
        %v2450 = vsub.f32 %v2418, %v2434
        %v2451 = vsub.f32 %v2419, %v2435
        %v2452 = vsub.f32 %v2420, %v2436
        %v2453 = vsub.f32 %v2421, %v2437
        %v2454 = vsub.f32 %v2422, %v2438
        %v2455 = vmax.f32 %v2439, 0.0
        %v2456 = vmax.f32 %v2440, 0.0
        %v2457 = vmax.f32 %v2441, 0.0
        %v2458 = vmax.f32 %v2442, 0.0
        %v2459 = vmax.f32 %v2443, 0.0
        %v2460 = vmax.f32 %v2444, 0.0
        %v2461 = vmax.f32 %v2445, 0.0
        %v2462 = vmax.f32 %v2446, 0.0
        %v2463 = vmax.f32 %v2447, 0.0
        %v2464 = vmax.f32 %v2448, 0.0
        %v2465 = vmax.f32 %v2449, 0.0
        %v2466 = vmax.f32 %v2450, 0.0
        %v2467 = vmax.f32 %v2451, 0.0
        %v2468 = vmax.f32 %v2452, 0.0
        %v2469 = vmax.f32 %v2453, 0.0
        %v2470 = vmax.f32 %v2454, 0.0
        %v2471 = vsub.f32 %v2295, %v2343
        %v2472 = vsub.f32 %v2296, %v2344
        %v2473 = vsub.f32 %v2297, %v2345
        %v2474 = vsub.f32 %v2298, %v2346
        %v2475 = vsub.f32 %v2299, %v2347
        %v2476 = vsub.f32 %v2300, %v2348
        %v2477 = vsub.f32 %v2301, %v2349
        %v2478 = vsub.f32 %v2302, %v2350
        %v2479 = vsub.f32 %v2303, %v2351
        %v2480 = vsub.f32 %v2304, %v2352
        %v2481 = vsub.f32 %v2305, %v2353
        %v2482 = vsub.f32 %v2306, %v2354
        %v2483 = vsub.f32 %v2307, %v2355
        %v2484 = vsub.f32 %v2308, %v2356
        %v2485 = vsub.f32 %v2309, %v2357
        %v2486 = vsub.f32 %v2310, %v2358
        %v2487 = vadd.f32 %v2455, 1e-05
        %v2488 = vadd.f32 %v2456, 1e-05
        %v2489 = vadd.f32 %v2457, 1e-05
        %v2490 = vadd.f32 %v2458, 1e-05
        %v2491 = vadd.f32 %v2459, 1e-05
        %v2492 = vadd.f32 %v2460, 1e-05
        %v2493 = vadd.f32 %v2461, 1e-05
        %v2494 = vadd.f32 %v2462, 1e-05
        %v2495 = vadd.f32 %v2463, 1e-05
        %v2496 = vadd.f32 %v2464, 1e-05
        %v2497 = vadd.f32 %v2465, 1e-05
        %v2498 = vadd.f32 %v2466, 1e-05
        %v2499 = vadd.f32 %v2467, 1e-05
        %v2500 = vadd.f32 %v2468, 1e-05
        %v2501 = vadd.f32 %v2469, 1e-05
        %v2502 = vadd.f32 %v2470, 1e-05
        %v2503 = vrsqrt.pop %v2487
        %v2504 = vrsqrt.pop %v2488
        %v2505 = vrsqrt.pop %v2489
        %v2506 = vrsqrt.pop %v2490
        %v2507 = vrsqrt.pop %v2491
        %v2508 = vrsqrt.pop %v2492
        %v2509 = vrsqrt.pop %v2493
        %v2510 = vrsqrt.pop %v2494
        %v2511 = vrsqrt.pop %v2495
        %v2512 = vrsqrt.pop %v2496
        %v2513 = vrsqrt.pop %v2497
        %v2514 = vrsqrt.pop %v2498
        %v2515 = vrsqrt.pop %v2499
        %v2516 = vrsqrt.pop %v2500
        %v2517 = vrsqrt.pop %v2501
        %v2518 = vrsqrt.pop %v2502
        %v2519 = vmul.f32 %v2471, %v2503
        %v2520 = vmul.f32 %v2472, %v2504
        %v2521 = vmul.f32 %v2473, %v2505
        %v2522 = vmul.f32 %v2474, %v2506
        %v2523 = vmul.f32 %v2475, %v2507
        %v2524 = vmul.f32 %v2476, %v2508
        %v2525 = vmul.f32 %v2477, %v2509
        %v2526 = vmul.f32 %v2478, %v2510
        %v2527 = vmul.f32 %v2479, %v2511
        %v2528 = vmul.f32 %v2480, %v2512
        %v2529 = vmul.f32 %v2481, %v2513
        %v2530 = vmul.f32 %v2482, %v2514
        %v2531 = vmul.f32 %v2483, %v2515
        %v2532 = vmul.f32 %v2484, %v2516
        %v2533 = vmul.f32 %v2485, %v2517
        %v2534 = vmul.f32 %v2486, %v2518
        %v2535 = vld [vmem:[%s8] sm:$0x1]
        %v2537 = vlaneseq
        %v2538 = vshrl.u32 %v2537, 7
        %v2539 = vsub.s32 0, %v2538
        %v2540 = vrot.slane %v2535, %v2539
        %v2542 = vmul.f32 %v2519, %v2540
        %v2543 = vmul.f32 %v2520, %v2540
        %v2544 = vmul.f32 %v2521, %v2540
        %v2545 = vmul.f32 %v2522, %v2540
        %v2546 = vmul.f32 %v2523, %v2540
        %v2547 = vmul.f32 %v2524, %v2540
        %v2548 = vmul.f32 %v2525, %v2540
        %v2549 = vmul.f32 %v2526, %v2540
        %v2550 = vmul.f32 %v2527, %v2540
        %v2551 = vmul.f32 %v2528, %v2540
        %v2552 = vmul.f32 %v2529, %v2540
        %v2553 = vmul.f32 %v2530, %v2540
        %v2554 = vmul.f32 %v2531, %v2540
        %v2555 = vmul.f32 %v2532, %v2540
        %v2556 = vmul.f32 %v2533, %v2540
        %v2557 = vmul.f32 %v2534, %v2540
        %v2558 = vld [vmem:[%s9] sm:$0x1]
        %v2560 = vlaneseq
        %v2561 = vshrl.u32 %v2560, 7
        %v2562 = vsub.s32 0, %v2561
        %v2563 = vrot.slane %v2558, %v2562
        %v2565 = vadd.f32 %v2542, %v2563
        %v2566 = vadd.f32 %v2543, %v2563
        %v2567 = vadd.f32 %v2544, %v2563
        %v2568 = vadd.f32 %v2545, %v2563
        %v2569 = vadd.f32 %v2546, %v2563
        %v2570 = vadd.f32 %v2547, %v2563
        %v2571 = vadd.f32 %v2548, %v2563
        %v2572 = vadd.f32 %v2549, %v2563
        %v2573 = vadd.f32 %v2550, %v2563
        %v2574 = vadd.f32 %v2551, %v2563
        %v2575 = vadd.f32 %v2552, %v2563
        %v2576 = vadd.f32 %v2553, %v2563
        %v2577 = vadd.f32 %v2554, %v2563
        %v2578 = vadd.f32 %v2555, %v2563
        %v2579 = vadd.f32 %v2556, %v2563
        %v2580 = vadd.f32 %v2557, %v2563
        %v2581 = vstv %s1512
        %v2582 = vadd.s32 %v1515, %v2581
        %v2583 = vadd.s32 %v1516, %v2581
        %v2584 = vadd.s32 %v1517, %v2581
        %v2585 = vadd.s32 %v1518, %v2581
        %v2586 = vadd.s32 %v1519, %v2581
        %v2587 = vadd.s32 %v1520, %v2581
        %v2588 = vadd.s32 %v1521, %v2581
        %v2589 = vadd.s32 %v1522, %v2581
        %v2590 = vadd.s32 %v1523, %v2581
        %v2591 = vadd.s32 %v1524, %v2581
        %v2592 = vadd.s32 %v1525, %v2581
        %v2593 = vadd.s32 %v1526, %v2581
        %v2594 = vadd.s32 %v1527, %v2581
        %v2595 = vadd.s32 %v1528, %v2581
        %v2596 = vadd.s32 %v1529, %v2581
        %v2597 = vadd.s32 %v1530, %v2581
        %vm2598 = vcmp.ge.s32.totalorder %v2582, 0
        %vm2599 = vcmp.ge.s32.totalorder %v2583, 0
        %vm2600 = vcmp.ge.s32.totalorder %v2584, 0
        %vm2601 = vcmp.ge.s32.totalorder %v2585, 0
        %vm2602 = vcmp.ge.s32.totalorder %v2586, 0
        %vm2603 = vcmp.ge.s32.totalorder %v2587, 0
        %vm2604 = vcmp.ge.s32.totalorder %v2588, 0
        %vm2605 = vcmp.ge.s32.totalorder %v2589, 0
        %vm2606 = vcmp.ge.s32.totalorder %v2590, 0
        %vm2607 = vcmp.ge.s32.totalorder %v2591, 0
        %vm2608 = vcmp.ge.s32.totalorder %v2592, 0
        %vm2609 = vcmp.ge.s32.totalorder %v2593, 0
        %vm2610 = vcmp.ge.s32.totalorder %v2594, 0
        %vm2611 = vcmp.ge.s32.totalorder %v2595, 0
        %vm2612 = vcmp.ge.s32.totalorder %v2596, 0
        %vm2613 = vcmp.ge.s32.totalorder %v2597, 0
        %vm2614 = vcmp.lt.s32.totalorder %v2582, 16
        %vm2615 = vcmp.lt.s32.totalorder %v2583, 16
        %vm2616 = vcmp.lt.s32.totalorder %v2584, 16
        %vm2617 = vcmp.lt.s32.totalorder %v2585, 16
        %vm2618 = vcmp.lt.s32.totalorder %v2586, 16
        %vm2619 = vcmp.lt.s32.totalorder %v2587, 16
        %vm2620 = vcmp.lt.s32.totalorder %v2588, 16
        %vm2621 = vcmp.lt.s32.totalorder %v2589, 16
        %vm2622 = vcmp.lt.s32.totalorder %v2590, 16
        %vm2623 = vcmp.lt.s32.totalorder %v2591, 16
        %vm2624 = vcmp.lt.s32.totalorder %v2592, 16
        %vm2625 = vcmp.lt.s32.totalorder %v2593, 16
        %vm2626 = vcmp.lt.s32.totalorder %v2594, 16
        %vm2627 = vcmp.lt.s32.totalorder %v2595, 16
        %vm2628 = vcmp.lt.s32.totalorder %v2596, 16
        %vm2629 = vcmp.lt.s32.totalorder %v2597, 16
        %vm2630 = vmand %vm2598, %vm2614
        %vm2631 = vmand %vm2599, %vm2615
        %vm2632 = vmand %vm2600, %vm2616
        %vm2633 = vmand %vm2601, %vm2617
        %vm2634 = vmand %vm2602, %vm2618
        %vm2635 = vmand %vm2603, %vm2619
        %vm2636 = vmand %vm2604, %vm2620
        %vm2637 = vmand %vm2605, %vm2621
        %vm2638 = vmand %vm2606, %vm2622
        %vm2639 = vmand %vm2607, %vm2623
        %vm2640 = vmand %vm2608, %vm2624
        %vm2641 = vmand %vm2609, %vm2625
        %vm2642 = vmand %vm2610, %vm2626
        %vm2643 = vmand %vm2611, %vm2627
        %vm2644 = vmand %vm2612, %vm2628
        %vm2645 = vmand %vm2613, %vm2629
        %v2646 = vsel %vm2630, 1, 0
        %v2647 = vsel %vm2631, 1, 0
        %v2648 = vsel %vm2632, 1, 0
        %v2649 = vsel %vm2633, 1, 0
        %v2650 = vsel %vm2634, 1, 0
        %v2651 = vsel %vm2635, 1, 0
        %v2652 = vsel %vm2636, 1, 0
        %v2653 = vsel %vm2637, 1, 0
        %v2654 = vsel %vm2638, 1, 0
        %v2655 = vsel %vm2639, 1, 0
        %v2656 = vsel %vm2640, 1, 0
        %v2657 = vsel %vm2641, 1, 0
        %v2658 = vsel %vm2642, 1, 0
        %v2659 = vsel %vm2643, 1, 0
        %v2660 = vsel %vm2644, 1, 0
        %v2661 = vsel %vm2645, 1, 0
        %vm2662 = vcmp.eq.s32.totalorder %v2646, 1
        %vm2663 = vcmp.eq.s32.totalorder %v2647, 1
        %vm2664 = vcmp.eq.s32.totalorder %v2648, 1
        %vm2665 = vcmp.eq.s32.totalorder %v2649, 1
        %vm2666 = vcmp.eq.s32.totalorder %v2650, 1
        %vm2667 = vcmp.eq.s32.totalorder %v2651, 1
        %vm2668 = vcmp.eq.s32.totalorder %v2652, 1
        %vm2669 = vcmp.eq.s32.totalorder %v2653, 1
        %vm2670 = vcmp.eq.s32.totalorder %v2654, 1
        %vm2671 = vcmp.eq.s32.totalorder %v2655, 1
        %vm2672 = vcmp.eq.s32.totalorder %v2656, 1
        %vm2673 = vcmp.eq.s32.totalorder %v2657, 1
        %vm2674 = vcmp.eq.s32.totalorder %v2658, 1
        %vm2675 = vcmp.eq.s32.totalorder %v2659, 1
        %vm2676 = vcmp.eq.s32.totalorder %v2660, 1
        %vm2677 = vcmp.eq.s32.totalorder %v2661, 1
        %v2678 = vsel %vm2662, %v2565, 0.0
        %v2679 = vsel %vm2663, %v2566, 0.0
        %v2680 = vsel %vm2664, %v2567, 0.0
        %v2681 = vsel %vm2665, %v2568, 0.0
        %v2682 = vsel %vm2666, %v2569, 0.0
        %v2683 = vsel %vm2667, %v2570, 0.0
        %v2684 = vsel %vm2668, %v2571, 0.0
        %v2685 = vsel %vm2669, %v2572, 0.0
        %v2686 = vsel %vm2670, %v2573, 0.0
        %v2687 = vsel %vm2671, %v2574, 0.0
        %v2688 = vsel %vm2672, %v2575, 0.0
        %v2689 = vsel %vm2673, %v2576, 0.0
        %v2690 = vsel %vm2674, %v2577, 0.0
        %v2691 = vsel %vm2675, %v2578, 0.0
        %v2692 = vsel %vm2676, %v2579, 0.0
        %v2693 = vsel %vm2677, %v2580, 0.0
        %v2694 = vpack.c.bf16 %v2679, %v2678
        %v2695 = vpack.c.bf16 %v2681, %v2680
        %v2696 = vpack.c.bf16 %v2683, %v2682
        %v2697 = vpack.c.bf16 %v2685, %v2684
        %v2698 = vpack.c.bf16 %v2687, %v2686
        %v2699 = vpack.c.bf16 %v2689, %v2688
        %v2700 = vpack.c.bf16 %v2691, %v2690
        %v2701 = vpack.c.bf16 %v2693, %v2692
        %v2702 = vld [vmem:[%s10] sm:$0x1]
        %v2703 = vld [vmem:[#allocation2] sm:$0x1]
        %2705 = vset.pattern.permute.xlu0 0
        %2706 = vperm.xlu0 %2705, %v2703
        %v2707 = vpop.permute.xlu0 %2706
        %v2709 = vlaneseq
        %v2710 = vshrl.u32 %v2709, 7
        %v2711 = vsub.s32 0, %v2710
        %v2712 = vrot.slane %v2707, %v2711
        %2713 = vmatprep.subr.bf16.mxu0 0
        %2714 = vmatpush1.bf16.xpose.msra.mxu0 %v2694
        %2715 = vmatprep.subr.bf16.mxu0 0
        %2716 = vmatpush1.bf16.xpose.msra.mxu0 %v2695
        %2717 = vmatprep.subr.bf16.mxu0 0
        %2718 = vmatpush1.bf16.xpose.msra.mxu0 %v2696
        %2719 = vmatprep.subr.bf16.mxu0 0
        %2720 = vmatpush1.bf16.xpose.msra.mxu0 %v2697
        %2721 = vmatprep.subr.bf16.mxu0 0
        %2722 = vmatpush1.bf16.xpose.msra.mxu0 %v2698
        %2723 = vmatprep.subr.bf16.mxu0 0
        %2724 = vmatpush1.bf16.xpose.msra.mxu0 %v2699
        %2725 = vmatprep.subr.bf16.mxu0 0
        %2726 = vmatpush1.bf16.xpose.msra.mxu0 %v2700
        %2727 = vmatprep.subr.bf16.mxu0 0
        %2728 = vmatpush1.bf16.xpose.msra.mxu0 %v2701
        %2729 = vmatprep.subr.bf16.mxu0 0
        %2730 = vmatpush1.bf16.xpose.msra.mxu0 0
        %2731 = vmatprep.subr.bf16.mxu0 0
        %2732 = vmatpush1.bf16.xpose.msra.mxu0 0
        %2733 = vmatprep.subr.bf16.mxu0 0
        %2734 = vmatpush1.bf16.xpose.msra.mxu0 0
        %2735 = vmatprep.subr.bf16.mxu0 0
        %2736 = vmatpush1.bf16.xpose.msra.mxu0 0
        %2737 = vmatprep.subr.bf16.mxu0 0
        %2738 = vmatpush1.bf16.xpose.msra.mxu0 0
        %2739 = vmatprep.subr.bf16.mxu0 0
        %2740 = vmatpush1.bf16.xpose.msra.mxu0 0
        %2741 = vmatprep.subr.bf16.mxu0 0
        %2742 = vmatpush1.bf16.xpose.msra.mxu0 0
        %2743 = vmatprep.subr.bf16.mxu0 0
        %2744 = vmatpush1.bf16.xpose.msra.mxu0 0
        %2745 = vmatprep.mubr.bf16.mxu0 0
        %2746 = vmatmul.mubr.bf16.gmra.mrb[0].mxu0 %v2702
        %v2747 = vpop.f32.mrb[0].mxu0
        %v2748 = vadd.f32 %v2712, %v2747
        %v2749 = vpop.f32.mrb[0].mxu0
        %v2750 = vpop.f32.mrb[0].mxu0
        %v2751 = vpop.f32.mrb[0].mxu0
        %2752 = vdwg.mxu0
        %v2753 = vld [vmem:[%s480] sm:$0x1]
        %v2754 = vmul.f32 %v2748, %v2753
        %2755 = vst [vmem:[%s465] sm:$0x1] %v2754
        %s2756 = sand.u32 %s317, 1
        %s2757 = scalar_lea.sflag [#allocation5], %s2756
        %s2758 = sand.u32 %s317, 1
        %s2759 = scalar_lea.vmem [#allocation6], %s2758
        // Predicated region
        $region73: #{tpu_custom_call.1} parent=67 // pred_check
          %p2760 = pneg %p327
        $region74: #{tpu_custom_call.1} parent=67 // pred_check_branch
          %2762 = sbr.rel (%p2760) target = $region76
        $region75: #{tpu_custom_call.1} parent=67 // pred_region
          %s2764 = ssub.s32 16, 16
          %2765 = vsyncadd %s2757, %s2764
          %s2766 = sadd.s32 %s34, %s33
          %s2767 = smul.addr %s2766, 16
          %s2768 = scalar_lea.hbm %s12, %s2767
          %s2770 = sshll.u32 %s2759, 4
          %s2771 = int_to_ptr.vmem [resolvable:$true] %s2770
          %2773 = dma.vmem_to_hbm [thread:$0]  %s2771, 16, %s2768, %s2757
        $region76: #{tpu_custom_call.1} parent=67 // pred_fallthru
          _
      $region68: #{tpu_custom_call.1} parent=5 // pred_fallthru
        _
      %p2774 = scmp.le.s32.totalorder 2, %s24
      // Predicated region
      $region77: #{tpu_custom_call.1} parent=5 // pred_check
        %p2775 = pneg %p2774
      $region78: #{tpu_custom_call.1} parent=5 // pred_check_branch
        %2777 = sbr.rel (%p2775) target = $region80
      $region79: #{tpu_custom_call.1} parent=5 // pred_region
        %s2778 = ssub.s32 %s24, 2
        // Predicated region
        $region81: #{tpu_custom_call.1} parent=79 // pred_check
          %p2779 = pneg %p333
        $region82: #{tpu_custom_call.1} parent=79 // pred_check_branch
          %2781 = sbr.rel (%p2779) target = $region84
        $region83: #{tpu_custom_call.1} parent=79 // pred_region
          %s2782 = sand.u32 %s318, 1
          %s2783 = scalar_lea.sflag [#allocation5], %s2782
          %s2784 = sand.u32 %s318, 1
          %s2785 = scalar_lea.vmem [#allocation6], %s2784
          %2786 = dma.done %s2783, 16
        $region84: #{tpu_custom_call.1} parent=79 // pred_fallthru
          _
      $region80: #{tpu_custom_call.1} parent=5 // pred_fallthru
        _
    $region6: #{tpu_custom_call.1} parent=1 // loop_footer
      %s28 = sadd.s32 1, %s24
    $region7: #{tpu_custom_call.1} parent=1 // loop_footer_branch
      %23 = sbr.rel target = $region3
    $region8: #{tpu_custom_call.1} parent=1 // loop_exit
      _
    %2787 = vsyncpa [#allocation4], 1
    %s2788 = scalar_lea.sflag [#allocation4], 1
    %2789 = vsyncpa %s2788, 1
    %2790 = vsyncpa [#allocation5], 1
    %s2791 = scalar_lea.sflag [#allocation5], 1
    %2792 = vsyncpa %s2791, 1

</llo_original>
